<compile_context>
chip_gen: v5e
topology: v5e:2x2
jax: 0.10.0
libtpu: 0.0.40
codegen_flags: <defaults>
</compile_context>

<pallas_src>
import functools
import math

import jax
import jax.numpy as jnp
from jax.experimental import pallas as pl
from jax.experimental.pallas import tpu as pltpu


def _round_up(v, m):
    return (v + m - 1) // m * m


def _pick_batch_tile(batch, jobs_padded):
    # Smallest batch tile making (batch_tile * jobs_padded) a multiple of 128 so
    # the x_T block / embedding-matmul output are lane-dense; grow (up to 8x) for
    # large batches.  Per-tile VMEM stays tiny (<1 MiB) -> fits every generation.
    bt0 = 128 // math.gcd(jobs_padded, 128)
    return bt0 * max(1, min(8, -(-batch // bt0)))


def _actor_kernel(x_t_ref, bias_ref,
                  wa_ref, ba_ref, wb_ref, bb_ref,
                  wq_ref, bq_ref, wq2_ref, bq2_ref,
                  vec_ref, vec2_ref, dec_ref,
                  probs_ref,
                  *, clip_logits: float, softmax_t: float):
    BT, Np = bias_ref.shape          # batch tile, jobs padded to a multiple of 8
    H = wq_ref.shape[0]

    # x block is transposed: (IN_pad, BT*Np) -- obs dim on sublanes, batch*jobs
    # lane-dense.  Fused embedding -> (identity Encoder) -> W_ref / W_ref2 1x1
    # convs as two standard MXU dots (weights on the LHS, no transposed dot),
    # then one cheap XLU transpose each to the (BT*Np, H) compute layout.
    # TODO(synk): Encoder(cfg) source is not provided; treated as identity
    # (requires embedding_size == hidden_size).
    xT = x_t_ref[...]                                                    # (IN_pad, BT*Np)
    ua_t = jnp.dot(wa_ref[...], xT, preferred_element_type=jnp.float32)  # (H, BT*Np)
    ub_t = jnp.dot(wb_ref[...], xT, preferred_element_type=jnp.float32)  # (H, BT*Np)
    u2a = (ua_t.T + ba_ref[...]).reshape(BT, Np, H)                       # glimpse proj
    u2b = (ub_t.T + bb_ref[...]).reshape(BT, Np, H)                       # pointer proj

    # Loop-invariant loads / broadcasts hoisted out of the unrolled glimpse loop.
    bias = bias_ref[...]                       # (BT, Np): +1e9*mask real cols, -1e30 pad cols
    wq = wq_ref[...]                           # (H, H), pre-transposed (in, out)
    bq = bq_ref[...]                           # (1, H)
    vec3 = vec_ref[...][None, :, :]            # (1, 1, H)
    inv_t = 1.0 / softmax_t

    # query = dec_input.repeat(batch, 1)
    query = jnp.broadcast_to(dec_ref[...], (BT, H))                       # (BT, H)

    # two glimpse steps (static unroll, matches `for i in range(2)`)
    for _ in range(2):
        q1 = jnp.dot(query, wq, preferred_element_type=jnp.float32) + bq  # (BT, H)
        t = jnp.tanh(q1[:, None, :] + u2a)                                 # (BT, Np, H)
        # u = bmm(V, tanh(.)) + 1e9*mask  (positive-mask semantics kept as in the reference)
        u = jnp.sum(vec3 * t, axis=-1) + bias                              # (BT, Np)
        u = (u - jnp.max(u, axis=-1, keepdims=True)) * inv_t
        ex = jnp.exp(u)
        a = ex * pl.reciprocal(jnp.sum(ex, axis=-1, keepdims=True), approx=True)
        # d = bmm(u2, a): batched (1,Np)x(Np,H) contraction on the otherwise idle MXU.
        query = jnp.einsum("bxn,bnh->bxh", a[:, None, :], u2a,
                           preferred_element_type=jnp.float32)[:, 0, :]    # (BT, H)

    # pointer head
    q2 = jnp.dot(query, wq2_ref[...], preferred_element_type=jnp.float32) + bq2_ref[...]
    t = jnp.tanh(q2[:, None, :] + u2b)                                     # (BT, Np, H)
    u = clip_logits * jnp.sum(vec2_ref[...][None, :, :] * t, axis=-1) + bias

    # probs = softmax(u, dim=-1); exact reciprocal (feeds log_prob for PG training);
    # padded job columns underflow to exactly 0.
    u = u - jnp.max(u, axis=-1, keepdims=True)
    ex = jnp.exp(u)
    probs_ref[...] = ex / jnp.sum(ex, axis=-1, keepdims=True)


def prepare_params(p):
    """One-time offline fusion / layout prep of the PyTorch parameters."""
    w_emb, b_emb = p["w_emb"], p["b_emb"]                    # (H, IN), (1, H)
    H, IN = w_emb.shape
    in_pad = _round_up(IN, 8)                                # obs dim on sublanes
    wA = jnp.dot(p["w_ref"], w_emb)                          # (H, IN)  fused glimpse proj
    wB = jnp.dot(p["w_ref2"], w_emb)                         # (H, IN)  fused pointer proj
    bA = jnp.dot(b_emb, p["w_ref"].T) + p["b_ref"]           # (1, H)
    bB = jnp.dot(b_emb, p["w_ref2"].T) + p["b_ref2"]         # (1, H)
    pad = ((0, 0), (0, in_pad - IN))
    return {
        "wA": jnp.pad(wA, pad), "bA": bA,                    # (H, IN_pad), (1, H)
        "wB": jnp.pad(wB, pad), "bB": bB,
        "wq_t": p["w_q"].T, "bq": p["b_q"],                  # (H, H) pre-transposed, (1, H)
        "wq2_t": p["w_q2"].T, "bq2": p["b_q2"],
        "vec": p["vec"], "vec2": p["vec2"], "dec": p["dec_input"],
    }


def actor_forward(x, mask, prep, *, clip_logits=10.0, softmax_t=1.5, batch_tile=None):
    B, N, IN = x.shape
    H = prep["wq_t"].shape[0]
    IN_pad = prep["wA"].shape[1]
    Np = _round_up(N, 8)                     # job dim padded to the SUBLANE multiple only
    if batch_tile is None:
        batch_tile = _pick_batch_tile(B, Np)
    B_pad = _round_up(max(B, batch_tile), batch_tile)
    n_tiles = B_pad // batch_tile

    # x passed transposed/flattened as (IN_pad, B_pad*Np): compact (no 128-lane
    # inflation of the 6-wide obs dim), one small XLA transpose-copy only.
    x_pad = jnp.pad(x.astype(jnp.float32),
                    ((0, B_pad - B), (0, Np - N), (0, IN_pad - IN)))
    x_t = x_pad.transpose(2, 0, 1).reshape(IN_pad, B_pad * Np)

    # Additive logit bias: +1e9*mask on real job columns (faithful to the
    # reference's `u = u + 1e9 * mask`), -1e30 on padded columns so their prob
    # is exactly 0.
    mask_pad = jnp.pad(mask.astype(jnp.float32), ((0, B_pad - B), (0, Np - N)))
    col_is_real = (jnp.arange(Np) < N)[None, :]
    bias = jnp.where(col_is_real, 1e9 * mask_pad, -1e30).astype(jnp.float32)

    kernel = functools.partial(_actor_kernel,
                               clip_logits=float(clip_logits),
                               softmax_t=float(softmax_t))

    def full_spec(arr):
        return pl.BlockSpec(arr.shape, lambda b: (0,) * arr.ndim)

    weights = (prep["wA"], prep["bA"], prep["wB"], prep["bB"],
               prep["wq_t"], prep["bq"], prep["wq2_t"], prep["bq2"],
               prep["vec"], prep["vec2"], prep["dec"])

    grid_spec = pltpu.PrefetchScalarGridSpec(
        num_scalar_prefetch=0,
        grid=(n_tiles,),
        in_specs=[
            pl.BlockSpec((IN_pad, batch_tile * Np), lambda b: (0, b)),   # x_T tile
            pl.BlockSpec((batch_tile, Np), lambda b: (b, 0)),            # bias tile
            *[full_spec(w) for w in weights],                            # small weights
        ],
        out_specs=pl.BlockSpec((batch_tile, Np), lambda b: (b, 0)),
    )

    probs_pad = pl.pallas_call(
        kernel,
        out_shape=jax.ShapeDtypeStruct((B_pad, Np), jnp.float32),
        grid_spec=grid_spec,
        compiler_params=pltpu.CompilerParams(
            dimension_semantics=("parallel",),          # batch tiles independent (megacore)
            vmem_limit_bytes=32 * 1024 * 1024,          # tiles are tiny; fits v7x's 64 MiB
        ),
    )(x_t, bias, *weights)
    return probs_pad[:B, :N]


def init_params(key, input_size, hidden_size, init_min=-0.1, init_max=0.1):
    """nn.init.uniform_(param, -0.1, 0.1) on every parameter (as in _initialize_weights)."""
    names_shapes = {
        "w_emb":   (hidden_size, input_size),   # Linear(input_size, embedding_size)
        "b_emb":   (1, hidden_size),
        "w_q":     (hidden_size, hidden_size),
        "b_q":     (1, hidden_size),
        "w_ref":   (hidden_size, hidden_size),  # Conv1d(H, H, 1) weight squeezed
        "b_ref":   (1, hidden_size),
        "w_q2":    (hidden_size, hidden_size),
        "b_q2":    (1, hidden_size),
        "w_ref2":  (hidden_size, hidden_size),
        "b_ref2":  (1, hidden_size),
        "vec":     (1, hidden_size),
        "vec2":    (1, hidden_size),
        "dec_input": (1, hidden_size),
    }
    params = {}
    keys = jax.random.split(key, len(names_shapes))
    for k, (name, shape) in zip(keys, names_shapes.items()):
        params[name] = jax.random.uniform(k, shape, jnp.float32,
                                          minval=init_min, maxval=init_max)
    return params


if __name__ == "__main__":
    # Small, forward-consistent shapes: batch=2, job_num=8, obs_dim=6,
    # embedding_size == hidden_size = 32.
    B, N, IN, H = 2, 8, 6, 32

    key = jax.random.PRNGKey(0)
    k_x, k_m, k_p, k_s = jax.random.split(key, 4)

    x = jax.random.normal(k_x, (B, N, IN), jnp.float32)
    mask = (jax.random.uniform(k_m, (B, N)) < 0.3).astype(jnp.float32)
    params = init_params(k_p, IN, H)
    prep = prepare_params(params)          # one-time offline fusion / layout prep

    fwd = jax.jit(functools.partial(actor_forward, clip_logits=10.0, softmax_t=1.5))
    probs = jax.block_until_ready(fwd(x, mask, prep))

    # train=True branch: Categorical(probs).sample() + log_prob (JAX glue, not the hot path)
    action = jax.random.categorical(k_s, jnp.log(probs), axis=-1)
    log_prob = jnp.log(probs[jnp.arange(B), action])
    jax.block_until_ready((action, log_prob))

    assert probs.shape == (B, N)
    # final softmax uses an exact reciprocal -> tight normalization tolerance
    assert bool(jnp.all(jnp.abs(jnp.sum(probs, axis=-1) - 1.0) < 1e-3))
    print("KERNEL_OK")
</pallas_src>

<mosaic_0001>
module attributes {stable_mosaic.version = 11 : i64} {
  func.func @_actor_kernel(%arg0: i32, %arg1: memref<8x128xf32, #tpu.memory_space<vmem>>, %arg2: memref<16x8xf32, #tpu.memory_space<vmem>>, %arg3: memref<32x8xf32, #tpu.memory_space<vmem>>, %arg4: memref<1x32xf32, #tpu.memory_space<vmem>>, %arg5: memref<32x8xf32, #tpu.memory_space<vmem>>, %arg6: memref<1x32xf32, #tpu.memory_space<vmem>>, %arg7: memref<32x32xf32, #tpu.memory_space<vmem>>, %arg8: memref<1x32xf32, #tpu.memory_space<vmem>>, %arg9: memref<32x32xf32, #tpu.memory_space<vmem>>, %arg10: memref<1x32xf32, #tpu.memory_space<vmem>>, %arg11: memref<1x32xf32, #tpu.memory_space<vmem>>, %arg12: memref<1x32xf32, #tpu.memory_space<vmem>>, %arg13: memref<1x32xf32, #tpu.memory_space<vmem>>, %arg14: memref<16x8xf32, #tpu.memory_space<vmem>>) attributes {dimension_semantics = [#tpu.dimension_semantics<parallel>], iteration_bounds = array<i64: 1>, scalar_prefetch = 0 : i64, scratch_operands = 0 : i64, tpu.core_type = #tpu.core_type<tc>, window_params = [{transform_indices = @transform_0, window_bounds = array<i64: 8, 128>}, {transform_indices = @transform_1, window_bounds = array<i64: 16, 8>}, {pipeline_mode = #tpu.pipeline_mode<synchronous>, transform_indices = @transform_2, window_bounds = array<i64: 32, 8>}, {pipeline_mode = #tpu.pipeline_mode<synchronous>, transform_indices = @transform_3, window_bounds = array<i64: 1, 32>}, {pipeline_mode = #tpu.pipeline_mode<synchronous>, transform_indices = @transform_4, window_bounds = array<i64: 32, 8>}, {pipeline_mode = #tpu.pipeline_mode<synchronous>, transform_indices = @transform_5, window_bounds = array<i64: 1, 32>}, {pipeline_mode = #tpu.pipeline_mode<synchronous>, transform_indices = @transform_6, window_bounds = array<i64: 32, 32>}, {pipeline_mode = #tpu.pipeline_mode<synchronous>, transform_indices = @transform_7, window_bounds = array<i64: 1, 32>}, {pipeline_mode = #tpu.pipeline_mode<synchronous>, transform_indices = @transform_8, window_bounds = array<i64: 32, 32>}, {pipeline_mode = #tpu.pipeline_mode<synchronous>, transform_indices = @transform_9, window_bounds = array<i64: 1, 32>}, {pipeline_mode = #tpu.pipeline_mode<synchronous>, transform_indices = @transform_10, window_bounds = array<i64: 1, 32>}, {pipeline_mode = #tpu.pipeline_mode<synchronous>, transform_indices = @transform_11, window_bounds = array<i64: 1, 32>}, {pipeline_mode = #tpu.pipeline_mode<synchronous>, transform_indices = @transform_12, window_bounds = array<i64: 1, 32>}, {transform_indices = @transform_13, window_bounds = array<i64: 16, 8>}]} {
    %c0 = arith.constant 0 : index
    %c0_0 = arith.constant 0 : index
    %0 = vector.load %arg1[%c0, %c0_0] : memref<8x128xf32, #tpu.memory_space<vmem>>, vector<8x128xf32>
    %c0_1 = arith.constant 0 : index
    %c0_2 = arith.constant 0 : index
    %1 = vector.load %arg3[%c0_1, %c0_2] : memref<32x8xf32, #tpu.memory_space<vmem>>, vector<32x8xf32>
    %cst = arith.constant dense<0.000000e+00> : vector<32x128xf32>
    %2 = tpu.matmul %1, %0, %cst {dimension_numbers = #tpu.dot_dimension_numbers<[1], [0], [0], [1], [0, 0, 1, 1], [], []>} : vector<32x8xf32>, vector<8x128xf32>, vector<32x128xf32> -> vector<32x128xf32>
    %c0_3 = arith.constant 0 : index
    %c0_4 = arith.constant 0 : index
    %3 = vector.load %arg5[%c0_3, %c0_4] : memref<32x8xf32, #tpu.memory_space<vmem>>, vector<32x8xf32>
    %cst_5 = arith.constant dense<0.000000e+00> : vector<32x128xf32>
    %4 = tpu.matmul %3, %0, %cst_5 {dimension_numbers = #tpu.dot_dimension_numbers<[1], [0], [0], [1], [0, 0, 1, 1], [], []>} : vector<32x8xf32>, vector<8x128xf32>, vector<32x128xf32> -> vector<32x128xf32>
    %5 = tpu.transpose %2, [1, 0] : vector<32x128xf32> -> vector<128x32xf32>
    %c0_6 = arith.constant 0 : index
    %c0_7 = arith.constant 0 : index
    %6 = vector.load %arg4[%c0_6, %c0_7] : memref<1x32xf32, #tpu.memory_space<vmem>>, vector<1x32xf32>
    %7 = vector.broadcast %6 : vector<1x32xf32> to vector<128x32xf32>
    %8 = arith.addf %5, %7 : vector<128x32xf32>
    %9 = vector.shape_cast %8 : vector<128x32xf32> to vector<16x8x32xf32>
    %10 = tpu.transpose %4, [1, 0] : vector<32x128xf32> -> vector<128x32xf32>
    %c0_8 = arith.constant 0 : index
    %c0_9 = arith.constant 0 : index
    %11 = vector.load %arg6[%c0_8, %c0_9] : memref<1x32xf32, #tpu.memory_space<vmem>>, vector<1x32xf32>
    %12 = vector.broadcast %11 : vector<1x32xf32> to vector<128x32xf32>
    %13 = arith.addf %10, %12 : vector<128x32xf32>
    %14 = vector.shape_cast %13 : vector<128x32xf32> to vector<16x8x32xf32>
    %c0_10 = arith.constant 0 : index
    %c0_11 = arith.constant 0 : index
    %15 = vector.load %arg2[%c0_10, %c0_11] : memref<16x8xf32, #tpu.memory_space<vmem>>, vector<16x8xf32>
    %c0_12 = arith.constant 0 : index
    %c0_13 = arith.constant 0 : index
    %16 = vector.load %arg7[%c0_12, %c0_13] : memref<32x32xf32, #tpu.memory_space<vmem>>, vector<32x32xf32>
    %c0_14 = arith.constant 0 : index
    %c0_15 = arith.constant 0 : index
    %17 = vector.load %arg8[%c0_14, %c0_15] : memref<1x32xf32, #tpu.memory_space<vmem>>, vector<1x32xf32>
    %c0_16 = arith.constant 0 : index
    %c0_17 = arith.constant 0 : index
    %18 = vector.load %arg11[%c0_16, %c0_17] : memref<1x32xf32, #tpu.memory_space<vmem>>, vector<1x32xf32>
    %19 = vector.shape_cast %18 : vector<1x32xf32> to vector<1x1x32xf32>
    %c0_18 = arith.constant 0 : index
    %c0_19 = arith.constant 0 : index
    %20 = vector.load %arg13[%c0_18, %c0_19] : memref<1x32xf32, #tpu.memory_space<vmem>>, vector<1x32xf32>
    %21 = vector.shape_cast %20 : vector<1x32xf32> to vector<1x32xf32>
    %22 = vector.broadcast %21 : vector<1x32xf32> to vector<16x32xf32>
    %cst_20 = arith.constant dense<0.000000e+00> : vector<16x32xf32>
    %23 = tpu.matmul %22, %16, %cst_20 {dimension_numbers = #tpu.dot_dimension_numbers<[1], [0], [0], [1], [0, 0, 1, 1], [], []>} : vector<16x32xf32>, vector<32x32xf32>, vector<16x32xf32> -> vector<16x32xf32>
    %24 = vector.broadcast %17 : vector<1x32xf32> to vector<16x32xf32>
    %25 = arith.addf %23, %24 : vector<16x32xf32>
    %26 = vector.shape_cast %25 : vector<16x32xf32> to vector<16x1x32xf32>
    %27 = vector.broadcast %26 : vector<16x1x32xf32> to vector<16x8x32xf32>
    %28 = arith.addf %27, %9 : vector<16x8x32xf32>
    %29 = math.tanh %28 : vector<16x8x32xf32>
    %30 = vector.broadcast %19 : vector<1x1x32xf32> to vector<16x8x32xf32>
    %31 = arith.mulf %30, %29 : vector<16x8x32xf32>
    %cst_21 = arith.constant dense<0.000000e+00> : vector<16x8xf32>
    %32 = vector.multi_reduction <add>, %31, %cst_21 [2] : vector<16x8x32xf32> to vector<16x8xf32>
    %33 = arith.addf %32, %15 : vector<16x8xf32>
    %cst_22 = arith.constant dense<0xFF800000> : vector<16xf32>
    %34 = vector.multi_reduction <maximumf>, %33, %cst_22 [1] : vector<16x8xf32> to vector<16xf32>
    %35 = vector.shape_cast %34 : vector<16xf32> to vector<16x1xf32>
    %36 = vector.broadcast %35 : vector<16x1xf32> to vector<16x8xf32>
    %37 = arith.subf %33, %36 : vector<16x8xf32>
    %cst_23 = arith.constant 0.666666686 : f32
    %38 = vector.broadcast %cst_23 : f32 to vector<16x8xf32>
    %39 = arith.mulf %37, %38 : vector<16x8xf32>
    %40 = math.exp %39 : vector<16x8xf32>
    %cst_24 = arith.constant dense<0.000000e+00> : vector<16xf32>
    %41 = vector.multi_reduction <add>, %40, %cst_24 [1] : vector<16x8xf32> to vector<16xf32>
    %42 = vector.shape_cast %41 : vector<16xf32> to vector<16x1xf32>
    %43 = tpu.reciprocal %42 {approx = true} : vector<16x1xf32> -> vector<16x1xf32>
    %44 = vector.broadcast %43 : vector<16x1xf32> to vector<16x8xf32>
    %45 = arith.mulf %40, %44 : vector<16x8xf32>
    %46 = vector.shape_cast %45 : vector<16x8xf32> to vector<16x1x8xf32>
    "tpu.trace_start"() <{level = 10 : i32, message = "bxn,bnh->bxh"}> : () -> ()
    %cst_25 = arith.constant dense<0.000000e+00> : vector<16x1x32xf32>
    %47 = tpu.matmul %46, %9, %cst_25 {dimension_numbers = #tpu.dot_dimension_numbers<[2], [1], [1], [2], [0, 0, 0, 1, 1, 2], [0], [0]>} : vector<16x1x8xf32>, vector<16x8x32xf32>, vector<16x1x32xf32> -> vector<16x1x32xf32>
    "tpu.trace_stop"() : () -> ()
    %48 = vector.shape_cast %47 : vector<16x1x32xf32> to vector<16x32xf32>
    %cst_26 = arith.constant dense<0.000000e+00> : vector<16x32xf32>
    %49 = tpu.matmul %48, %16, %cst_26 {dimension_numbers = #tpu.dot_dimension_numbers<[1], [0], [0], [1], [0, 0, 1, 1], [], []>} : vector<16x32xf32>, vector<32x32xf32>, vector<16x32xf32> -> vector<16x32xf32>
    %50 = vector.broadcast %17 : vector<1x32xf32> to vector<16x32xf32>
    %51 = arith.addf %49, %50 : vector<16x32xf32>
    %52 = vector.shape_cast %51 : vector<16x32xf32> to vector<16x1x32xf32>
    %53 = vector.broadcast %52 : vector<16x1x32xf32> to vector<16x8x32xf32>
    %54 = arith.addf %53, %9 : vector<16x8x32xf32>
    %55 = math.tanh %54 : vector<16x8x32xf32>
    %56 = vector.broadcast %19 : vector<1x1x32xf32> to vector<16x8x32xf32>
    %57 = arith.mulf %56, %55 : vector<16x8x32xf32>
    %cst_27 = arith.constant dense<0.000000e+00> : vector<16x8xf32>
    %58 = vector.multi_reduction <add>, %57, %cst_27 [2] : vector<16x8x32xf32> to vector<16x8xf32>
    %59 = arith.addf %58, %15 : vector<16x8xf32>
    %cst_28 = arith.constant dense<0xFF800000> : vector<16xf32>
    %60 = vector.multi_reduction <maximumf>, %59, %cst_28 [1] : vector<16x8xf32> to vector<16xf32>
    %61 = vector.shape_cast %60 : vector<16xf32> to vector<16x1xf32>
    %62 = vector.broadcast %61 : vector<16x1xf32> to vector<16x8xf32>
    %63 = arith.subf %59, %62 : vector<16x8xf32>
    %cst_29 = arith.constant 0.666666686 : f32
    %64 = vector.broadcast %cst_29 : f32 to vector<16x8xf32>
    %65 = arith.mulf %63, %64 : vector<16x8xf32>
    %66 = math.exp %65 : vector<16x8xf32>
    %cst_30 = arith.constant dense<0.000000e+00> : vector<16xf32>
    %67 = vector.multi_reduction <add>, %66, %cst_30 [1] : vector<16x8xf32> to vector<16xf32>
    %68 = vector.shape_cast %67 : vector<16xf32> to vector<16x1xf32>
    %69 = tpu.reciprocal %68 {approx = true} : vector<16x1xf32> -> vector<16x1xf32>
    %70 = vector.broadcast %69 : vector<16x1xf32> to vector<16x8xf32>
    %71 = arith.mulf %66, %70 : vector<16x8xf32>
    %72 = vector.shape_cast %71 : vector<16x8xf32> to vector<16x1x8xf32>
    "tpu.trace_start"() <{level = 10 : i32, message = "bxn,bnh->bxh"}> : () -> ()
    %cst_31 = arith.constant dense<0.000000e+00> : vector<16x1x32xf32>
    %73 = tpu.matmul %72, %9, %cst_31 {dimension_numbers = #tpu.dot_dimension_numbers<[2], [1], [1], [2], [0, 0, 0, 1, 1, 2], [0], [0]>} : vector<16x1x8xf32>, vector<16x8x32xf32>, vector<16x1x32xf32> -> vector<16x1x32xf32>
    "tpu.trace_stop"() : () -> ()
    %74 = vector.shape_cast %73 : vector<16x1x32xf32> to vector<16x32xf32>
    %c0_32 = arith.constant 0 : index
    %c0_33 = arith.constant 0 : index
    %75 = vector.load %arg9[%c0_32, %c0_33] : memref<32x32xf32, #tpu.memory_space<vmem>>, vector<32x32xf32>
    %cst_34 = arith.constant dense<0.000000e+00> : vector<16x32xf32>
    %76 = tpu.matmul %74, %75, %cst_34 {dimension_numbers = #tpu.dot_dimension_numbers<[1], [0], [0], [1], [0, 0, 1, 1], [], []>} : vector<16x32xf32>, vector<32x32xf32>, vector<16x32xf32> -> vector<16x32xf32>
    %c0_35 = arith.constant 0 : index
    %c0_36 = arith.constant 0 : index
    %77 = vector.load %arg10[%c0_35, %c0_36] : memref<1x32xf32, #tpu.memory_space<vmem>>, vector<1x32xf32>
    %78 = vector.broadcast %77 : vector<1x32xf32> to vector<16x32xf32>
    %79 = arith.addf %76, %78 : vector<16x32xf32>
    %80 = vector.shape_cast %79 : vector<16x32xf32> to vector<16x1x32xf32>
    %81 = vector.broadcast %80 : vector<16x1x32xf32> to vector<16x8x32xf32>
    %82 = arith.addf %81, %14 : vector<16x8x32xf32>
    %83 = math.tanh %82 : vector<16x8x32xf32>
    %c0_37 = arith.constant 0 : index
    %c0_38 = arith.constant 0 : index
    %84 = vector.load %arg12[%c0_37, %c0_38] : memref<1x32xf32, #tpu.memory_space<vmem>>, vector<1x32xf32>
    %85 = vector.shape_cast %84 : vector<1x32xf32> to vector<1x1x32xf32>
    %86 = vector.broadcast %85 : vector<1x1x32xf32> to vector<16x8x32xf32>
    %87 = arith.mulf %86, %83 : vector<16x8x32xf32>
    %cst_39 = arith.constant dense<0.000000e+00> : vector<16x8xf32>
    %88 = vector.multi_reduction <add>, %87, %cst_39 [2] : vector<16x8x32xf32> to vector<16x8xf32>
    %cst_40 = arith.constant 1.000000e+01 : f32
    %89 = vector.broadcast %cst_40 : f32 to vector<16x8xf32>
    %90 = arith.mulf %89, %88 : vector<16x8xf32>
    %91 = arith.addf %90, %15 : vector<16x8xf32>
    %cst_41 = arith.constant dense<0xFF800000> : vector<16xf32>
    %92 = vector.multi_reduction <maximumf>, %91, %cst_41 [1] : vector<16x8xf32> to vector<16xf32>
    %93 = vector.shape_cast %92 : vector<16xf32> to vector<16x1xf32>
    %94 = vector.broadcast %93 : vector<16x1xf32> to vector<16x8xf32>
    %95 = arith.subf %91, %94 : vector<16x8xf32>
    %96 = math.exp %95 : vector<16x8xf32>
    %cst_42 = arith.constant dense<0.000000e+00> : vector<16xf32>
    %97 = vector.multi_reduction <add>, %96, %cst_42 [1] : vector<16x8xf32> to vector<16xf32>
    %98 = vector.shape_cast %97 : vector<16xf32> to vector<16x1xf32>
    %99 = vector.broadcast %98 : vector<16x1xf32> to vector<16x8xf32>
    %100 = arith.divf %96, %99 : vector<16x8xf32>
    %c0_43 = arith.constant 0 : index
    %c0_44 = arith.constant 0 : index
    %101 = vector.load %arg14[%c0_43, %c0_44] : memref<16x8xf32, #tpu.memory_space<vmem>>, vector<16x8xf32>
    tpu.vector_store %arg14[%c0_43, %c0_44], %100 {strides = array<i32>} : memref<16x8xf32, #tpu.memory_space<vmem>>, vector<16x8xf32>,
    return
  }
  func.func @transform_0(%arg0: i32) -> (i32, i32) {
    %c0_i32 = arith.constant 0 : i32
    %c0_i32_0 = arith.constant 0 : i32
    return %c0_i32, %arg0 : i32, i32
  }
  func.func @transform_1(%arg0: i32) -> (i32, i32) {
    %c0_i32 = arith.constant 0 : i32
    %c0_i32_0 = arith.constant 0 : i32
    return %arg0, %c0_i32 : i32, i32
  }
  func.func @transform_2(%arg0: i32) -> (i32, i32) {
    %c0_i32 = arith.constant 0 : i32
    %c0_i32_0 = arith.constant 0 : i32
    %c0_i32_1 = arith.constant 0 : i32
    return %c0_i32, %c0_i32_0 : i32, i32
  }
  func.func @transform_3(%arg0: i32) -> (i32, i32) {
    %c0_i32 = arith.constant 0 : i32
    %c0_i32_0 = arith.constant 0 : i32
    %c0_i32_1 = arith.constant 0 : i32
    return %c0_i32, %c0_i32_0 : i32, i32
  }
  func.func @transform_4(%arg0: i32) -> (i32, i32) {
    %c0_i32 = arith.constant 0 : i32
    %c0_i32_0 = arith.constant 0 : i32
    %c0_i32_1 = arith.constant 0 : i32
    return %c0_i32, %c0_i32_0 : i32, i32
  }
  func.func @transform_5(%arg0: i32) -> (i32, i32) {
    %c0_i32 = arith.constant 0 : i32
    %c0_i32_0 = arith.constant 0 : i32
    %c0_i32_1 = arith.constant 0 : i32
    return %c0_i32, %c0_i32_0 : i32, i32
  }
  func.func @transform_6(%arg0: i32) -> (i32, i32) {
    %c0_i32 = arith.constant 0 : i32
    %c0_i32_0 = arith.constant 0 : i32
    %c0_i32_1 = arith.constant 0 : i32
    return %c0_i32, %c0_i32_0 : i32, i32
  }
  func.func @transform_7(%arg0: i32) -> (i32, i32) {
    %c0_i32 = arith.constant 0 : i32
    %c0_i32_0 = arith.constant 0 : i32
    %c0_i32_1 = arith.constant 0 : i32
    return %c0_i32, %c0_i32_0 : i32, i32
  }
  func.func @transform_8(%arg0: i32) -> (i32, i32) {
    %c0_i32 = arith.constant 0 : i32
    %c0_i32_0 = arith.constant 0 : i32
    %c0_i32_1 = arith.constant 0 : i32
    return %c0_i32, %c0_i32_0 : i32, i32
  }
  func.func @transform_9(%arg0: i32) -> (i32, i32) {
    %c0_i32 = arith.constant 0 : i32
    %c0_i32_0 = arith.constant 0 : i32
    %c0_i32_1 = arith.constant 0 : i32
    return %c0_i32, %c0_i32_0 : i32, i32
  }
  func.func @transform_10(%arg0: i32) -> (i32, i32) {
    %c0_i32 = arith.constant 0 : i32
    %c0_i32_0 = arith.constant 0 : i32
    %c0_i32_1 = arith.constant 0 : i32
    return %c0_i32, %c0_i32_0 : i32, i32
  }
  func.func @transform_11(%arg0: i32) -> (i32, i32) {
    %c0_i32 = arith.constant 0 : i32
    %c0_i32_0 = arith.constant 0 : i32
    %c0_i32_1 = arith.constant 0 : i32
    return %c0_i32, %c0_i32_0 : i32, i32
  }
  func.func @transform_12(%arg0: i32) -> (i32, i32) {
    %c0_i32 = arith.constant 0 : i32
    %c0_i32_0 = arith.constant 0 : i32
    %c0_i32_1 = arith.constant 0 : i32
    return %c0_i32, %c0_i32_0 : i32, i32
  }
  func.func @transform_13(%arg0: i32) -> (i32, i32) {
    %c0_i32 = arith.constant 0 : i32
    %c0_i32_0 = arith.constant 0 : i32
    return %arg0, %c0_i32 : i32, i32
  }
}

</mosaic_0001>

<llo_original>
// kernel: actor_forward.1
$region0: #{actor_forward.1}
  #allocation0 [shape = 'u32[]', space=smem, size = 0x4, offset = 0x4, fixed_abs, tag = 'smem constant byte address 0x4 - core index']
  #allocation1 [shape = 'u32[72,128]{1,0:T(1,128)}', space=vmem, size = 0x9000, scoped, tag = 'internal scratch']
  %s0 = inlined_call_operand.vmem [shape: f32[8,128], index: 0, kind: input, shape index: {}]
  %s1 = inlined_call_operand.vmem [shape: f32[16,8], index: 1, kind: input, shape index: {}]
  %s2 = inlined_call_operand.vmem [shape: f32[32,8], index: 2, kind: input, shape index: {}]
  %s3 = inlined_call_operand.vmem [shape: f32[1,32], index: 3, kind: input, shape index: {}]
  %s4 = inlined_call_operand.vmem [shape: f32[32,8], index: 4, kind: input, shape index: {}]
  %s5 = inlined_call_operand.vmem [shape: f32[1,32], index: 5, kind: input, shape index: {}]
  %s6 = inlined_call_operand.vmem [shape: f32[32,32], index: 6, kind: input, shape index: {}]
  %s7 = inlined_call_operand.vmem [shape: f32[1,32], index: 7, kind: input, shape index: {}]
  %s8 = inlined_call_operand.vmem [shape: f32[32,32], index: 8, kind: input, shape index: {}]
  %s9 = inlined_call_operand.vmem [shape: f32[1,32], index: 9, kind: input, shape index: {}]
  %s10 = inlined_call_operand.vmem [shape: f32[1,32], index: 10, kind: input, shape index: {}]
  %s11 = inlined_call_operand.vmem [shape: f32[1,32], index: 11, kind: input, shape index: {}]
  %s12 = inlined_call_operand.vmem [shape: f32[1,32], index: 12, kind: input, shape index: {}]
  %s13 = inlined_call_operand.vmem [shape: f32[16,8], index: 13, kind: output, shape index: {}]
  %s14 = sld [smem:[#allocation0]]
  $region62: #{actor_forward.1} parent=0
    _
  %s16 = ssub.s32 1, %s14
  %s17 = scalar_select 0, %s16, %s14
  // Predicated region
  $region2: #{actor_forward.1} parent=0 // pred_check
    _
  $region3: #{actor_forward.1} parent=0 // pred_check_branch
    %19 = sbr.rel (0) target = $region5
  $region4: #{actor_forward.1} parent=0 // pred_region
    _
  $region5: #{actor_forward.1} parent=0 // pred_fallthru
    _
  // Predicated region
  $region6: #{actor_forward.1} parent=0 // pred_check
    _
  $region7: #{actor_forward.1} parent=0 // pred_check_branch
    %21 = sbr.rel (0) target = $region9
  $region8: #{actor_forward.1} parent=0 // pred_region
    _
  $region9: #{actor_forward.1} parent=0 // pred_fallthru
    _
  // Predicated region
  $region10: #{actor_forward.1} parent=0 // pred_check
    _
  $region11: #{actor_forward.1} parent=0 // pred_check_branch
    %23 = sbr.rel (0) target = $region13
  $region12: #{actor_forward.1} parent=0 // pred_region
    _
  $region13: #{actor_forward.1} parent=0 // pred_fallthru
    _
  // Predicated region
  $region14: #{actor_forward.1} parent=0 // pred_check
    _
  $region15: #{actor_forward.1} parent=0 // pred_check_branch
    %25 = sbr.rel (0) target = $region17
  $region16: #{actor_forward.1} parent=0 // pred_region
    _
  $region17: #{actor_forward.1} parent=0 // pred_fallthru
    _
  // Predicated region
  $region18: #{actor_forward.1} parent=0 // pred_check
    _
  $region19: #{actor_forward.1} parent=0 // pred_check_branch
    %27 = sbr.rel (0) target = $region21
  $region20: #{actor_forward.1} parent=0 // pred_region
    _
  $region21: #{actor_forward.1} parent=0 // pred_fallthru
    _
  // Predicated region
  $region22: #{actor_forward.1} parent=0 // pred_check
    _
  $region23: #{actor_forward.1} parent=0 // pred_check_branch
    %29 = sbr.rel (0) target = $region25
  $region24: #{actor_forward.1} parent=0 // pred_region
    _
  $region25: #{actor_forward.1} parent=0 // pred_fallthru
    _
  // Predicated region
  $region26: #{actor_forward.1} parent=0 // pred_check
    _
  $region27: #{actor_forward.1} parent=0 // pred_check_branch
    %31 = sbr.rel (0) target = $region29
  $region28: #{actor_forward.1} parent=0 // pred_region
    _
  $region29: #{actor_forward.1} parent=0 // pred_fallthru
    _
  // Predicated region
  $region30: #{actor_forward.1} parent=0 // pred_check
    _
  $region31: #{actor_forward.1} parent=0 // pred_check_branch
    %33 = sbr.rel (0) target = $region33
  $region32: #{actor_forward.1} parent=0 // pred_region
    _
  $region33: #{actor_forward.1} parent=0 // pred_fallthru
    _
  // Predicated region
  $region34: #{actor_forward.1} parent=0 // pred_check
    _
  $region35: #{actor_forward.1} parent=0 // pred_check_branch
    %35 = sbr.rel (0) target = $region37
  $region36: #{actor_forward.1} parent=0 // pred_region
    _
  $region37: #{actor_forward.1} parent=0 // pred_fallthru
    _
  // Predicated region
  $region38: #{actor_forward.1} parent=0 // pred_check
    _
  $region39: #{actor_forward.1} parent=0 // pred_check_branch
    %37 = sbr.rel (0) target = $region41
  $region40: #{actor_forward.1} parent=0 // pred_region
    _
  $region41: #{actor_forward.1} parent=0 // pred_fallthru
    _
  // Predicated region
  $region42: #{actor_forward.1} parent=0 // pred_check
    _
  $region43: #{actor_forward.1} parent=0 // pred_check_branch
    %39 = sbr.rel (0) target = $region45
  $region44: #{actor_forward.1} parent=0 // pred_region
    _
  $region45: #{actor_forward.1} parent=0 // pred_fallthru
    _
  // Predicated region
  $region46: #{actor_forward.1} parent=0 // pred_check
    _
  $region47: #{actor_forward.1} parent=0 // pred_check_branch
    %41 = sbr.rel (0) target = $region49
  $region48: #{actor_forward.1} parent=0 // pred_region
    _
  $region49: #{actor_forward.1} parent=0 // pred_fallthru
    _
  // Predicated region
  $region50: #{actor_forward.1} parent=0 // pred_check
    _
  $region51: #{actor_forward.1} parent=0 // pred_check_branch
    %43 = sbr.rel (0) target = $region53
  $region52: #{actor_forward.1} parent=0 // pred_region
    _
  $region53: #{actor_forward.1} parent=0 // pred_fallthru
    _
  %v44 = vld [vmem:[%s0] sm:$0xff]
  %v45 = vld [vmem:[%s2] sm:$0xff]
  %v46 = vld [vmem:[%s2 + $0x8] sm:$0xff]
  %v47 = vld [vmem:[%s2 + $0x10] sm:$0xff]
  %v48 = vld [vmem:[%s2 + $0x18] sm:$0xff]
  %vm49 = vcmask 64512
  %v51 = vsel %vm49, %v45, 0
  %v54 = vsel %vm49, %v46, 0
  %v57 = vsel %vm49, %v47, 0
  %v60 = vsel %vm49, %v48, 0
  %62 = vmatpush.msra.mxu0 0.0
  %63 = vmatpush.msra.mxu0 0.0
  %64 = vmatpush.msra.mxu0 0.0
  %65 = vmatpush.msra.mxu0 0.0
  %66 = vmatpush.msra.mxu0 0.0
  %67 = vmatpush.msra.mxu0 0.0
  %68 = vmatpush.msra.mxu0 0.0
  %69 = vmatpush.msra.mxu0 0.0
  %70 = vmatpush.msra.mxu0 0.0
  %71 = vmatpush.msra.mxu0 0.0
  %72 = vmatpush.msra.mxu0 0.0
  %73 = vmatpush.msra.mxu0 0.0
  %74 = vmatpush.msra.mxu0 0.0
  %75 = vmatpush.msra.mxu0 0.0
  %76 = vmatpush.msra.mxu0 0.0
  %77 = vmatpush.msra.mxu0 %v44
  %78 = vmatmul.f32.gmra.mxu0 %v51
  %v79 = vpop.f32.mrf.mxu0
  %v80 = vadd.f32 0.0, %v79
  %81 = vmatmul.f32.gmra.mxu0 %v54
  %v82 = vpop.f32.mrf.mxu0
  %v83 = vadd.f32 0.0, %v82
  %84 = vmatmul.f32.gmra.mxu0 %v57
  %v85 = vpop.f32.mrf.mxu0
  %v86 = vadd.f32 0.0, %v85
  %87 = vmatmul.f32.gmra.mxu0 %v60
  %v88 = vpop.f32.mrf.mxu0
  %v89 = vadd.f32 0.0, %v88
  %90 = vdwg.mxu0
  %v91 = vld [vmem:[%s4] sm:$0xff]
  %v92 = vld [vmem:[%s4 + $0x8] sm:$0xff]
  %v93 = vld [vmem:[%s4 + $0x10] sm:$0xff]
  %v94 = vld [vmem:[%s4 + $0x18] sm:$0xff]
  %v96 = vsel %vm49, %v91, 0
  %v99 = vsel %vm49, %v92, 0
  %v102 = vsel %vm49, %v93, 0
  %v105 = vsel %vm49, %v94, 0
  %107 = vmatpush.msra.mxu0 0.0
  %108 = vmatpush.msra.mxu0 0.0
  %109 = vmatpush.msra.mxu0 0.0
  %110 = vmatpush.msra.mxu0 0.0
  %111 = vmatpush.msra.mxu0 0.0
  %112 = vmatpush.msra.mxu0 0.0
  %113 = vmatpush.msra.mxu0 0.0
  %114 = vmatpush.msra.mxu0 0.0
  %115 = vmatpush.msra.mxu0 0.0
  %116 = vmatpush.msra.mxu0 0.0
  %117 = vmatpush.msra.mxu0 0.0
  %118 = vmatpush.msra.mxu0 0.0
  %119 = vmatpush.msra.mxu0 0.0
  %120 = vmatpush.msra.mxu0 0.0
  %121 = vmatpush.msra.mxu0 0.0
  %122 = vmatpush.msra.mxu0 %v44
  %123 = vmatmul.f32.gmra.mxu0 %v96
  %v124 = vpop.f32.mrf.mxu0
  %v125 = vadd.f32 0.0, %v124
  %126 = vmatmul.f32.gmra.mxu0 %v99
  %v127 = vpop.f32.mrf.mxu0
  %v128 = vadd.f32 0.0, %v127
  %129 = vmatmul.f32.gmra.mxu0 %v102
  %v130 = vpop.f32.mrf.mxu0
  %v131 = vadd.f32 0.0, %v130
  %132 = vmatmul.f32.gmra.mxu0 %v105
  %v133 = vpop.f32.mrf.mxu0
  %v134 = vadd.f32 0.0, %v133
  %135 = vdwg.mxu0
  %136 = vxpose.xlu0.b32.start [1/16] %v80, 128
  %137 = vxpose.xlu0.b32.cont [2/16] %v83, 128
  %138 = vxpose.xlu0.b32.cont [3/16] %v86, 128
  %139 = vxpose.xlu0.b32.cont [4/16] %v89, 128
  %140 = vxpose.xlu0.b32.cont [5/16] 0.0, 128
  %141 = vxpose.xlu0.b32.cont [6/16] 0.0, 128
  %142 = vxpose.xlu0.b32.cont [7/16] 0.0, 128
  %143 = vxpose.xlu0.b32.cont [8/16] 0.0, 128
  %144 = vxpose.xlu0.b32.cont [9/16] 0.0, 128
  %145 = vxpose.xlu0.b32.cont [10/16] 0.0, 128
  %146 = vxpose.xlu0.b32.cont [11/16] 0.0, 128
  %147 = vxpose.xlu0.b32.cont [12/16] 0.0, 128
  %148 = vxpose.xlu0.b32.cont [13/16] 0.0, 128
  %149 = vxpose.xlu0.b32.cont [14/16] 0.0, 128
  %150 = vxpose.xlu0.b32.cont [15/16] 0.0, 128
  %151 = vxpose.xlu0.b32.end [16/16] 0.0, 128
  %v152 = vpop.trf.xlu0
  %v153 = vpop.trf.xlu0
  %v154 = vpop.trf.xlu0
  %v155 = vpop.trf.xlu0
  %v156 = vpop.trf.xlu0
  %v157 = vpop.trf.xlu0
  %v158 = vpop.trf.xlu0
  %v159 = vpop.trf.xlu0
  %v160 = vpop.trf.xlu0
  %v161 = vpop.trf.xlu0
  %v162 = vpop.trf.xlu0
  %v163 = vpop.trf.xlu0
  %v164 = vpop.trf.xlu0
  %v165 = vpop.trf.xlu0
  %v166 = vpop.trf.xlu0
  %v167 = vpop.trf.xlu0
  %v168 = vld [vmem:[%s3] sm:$0x1]
  %v170 = vperm.slane %v168, 0
  %v172 = vadd.f32 %v152, %v170
  %v173 = vadd.f32 %v153, %v170
  %v174 = vadd.f32 %v154, %v170
  %v175 = vadd.f32 %v155, %v170
  %v176 = vadd.f32 %v156, %v170
  %v177 = vadd.f32 %v157, %v170
  %v178 = vadd.f32 %v158, %v170
  %v179 = vadd.f32 %v159, %v170
  %v180 = vadd.f32 %v160, %v170
  %v181 = vadd.f32 %v161, %v170
  %v182 = vadd.f32 %v162, %v170
  %v183 = vadd.f32 %v163, %v170
  %v184 = vadd.f32 %v164, %v170
  %v185 = vadd.f32 %v165, %v170
  %v186 = vadd.f32 %v166, %v170
  %v187 = vadd.f32 %v167, %v170
  %188 = vxpose.xlu0.b32.start [1/16] %v125, 128
  %189 = vxpose.xlu0.b32.cont [2/16] %v128, 128
  %190 = vxpose.xlu0.b32.cont [3/16] %v131, 128
  %191 = vxpose.xlu0.b32.cont [4/16] %v134, 128
  %192 = vxpose.xlu0.b32.cont [5/16] 0.0, 128
  %193 = vxpose.xlu0.b32.cont [6/16] 0.0, 128
  %194 = vxpose.xlu0.b32.cont [7/16] 0.0, 128
  %195 = vxpose.xlu0.b32.cont [8/16] 0.0, 128
  %196 = vxpose.xlu0.b32.cont [9/16] 0.0, 128
  %197 = vxpose.xlu0.b32.cont [10/16] 0.0, 128
  %198 = vxpose.xlu0.b32.cont [11/16] 0.0, 128
  %199 = vxpose.xlu0.b32.cont [12/16] 0.0, 128
  %200 = vxpose.xlu0.b32.cont [13/16] 0.0, 128
  %201 = vxpose.xlu0.b32.cont [14/16] 0.0, 128
  %202 = vxpose.xlu0.b32.cont [15/16] 0.0, 128
  %203 = vxpose.xlu0.b32.end [16/16] 0.0, 128
  %v204 = vpop.trf.xlu0
  %v205 = vpop.trf.xlu0
  %v206 = vpop.trf.xlu0
  %v207 = vpop.trf.xlu0
  %v208 = vpop.trf.xlu0
  %v209 = vpop.trf.xlu0
  %v210 = vpop.trf.xlu0
  %v211 = vpop.trf.xlu0
  %v212 = vpop.trf.xlu0
  %v213 = vpop.trf.xlu0
  %v214 = vpop.trf.xlu0
  %v215 = vpop.trf.xlu0
  %v216 = vpop.trf.xlu0
  %v217 = vpop.trf.xlu0
  %v218 = vpop.trf.xlu0
  %v219 = vpop.trf.xlu0
  %v220 = vld [vmem:[%s5] sm:$0x1]
  %v222 = vperm.slane %v220, 0
  %v224 = vadd.f32 %v204, %v222
  %v225 = vadd.f32 %v205, %v222
  %v226 = vadd.f32 %v206, %v222
  %v227 = vadd.f32 %v207, %v222
  %v228 = vadd.f32 %v208, %v222
  %v229 = vadd.f32 %v209, %v222
  %v230 = vadd.f32 %v210, %v222
  %v231 = vadd.f32 %v211, %v222
  %v232 = vadd.f32 %v212, %v222
  %v233 = vadd.f32 %v213, %v222
  %v234 = vadd.f32 %v214, %v222
  %v235 = vadd.f32 %v215, %v222
  %v236 = vadd.f32 %v216, %v222
  %v237 = vadd.f32 %v217, %v222
  %v238 = vadd.f32 %v218, %v222
  %v239 = vadd.f32 %v219, %v222
  %v240 = vld [vmem:[%s1] sm:$0xff]
  %v241 = vld [vmem:[%s1 + $0x8] sm:$0xff]
  %v242 = vld [vmem:[%s6] sm:$0xff]
  %v243 = vld [vmem:[%s6 + $0x8] sm:$0xff]
  %v244 = vld [vmem:[%s6 + $0x10] sm:$0xff]
  %v245 = vld [vmem:[%s6 + $0x18] sm:$0xff]
  %v246 = vld [vmem:[%s7] sm:$0x1]
  %v247 = vld [vmem:[%s10] sm:$0x1]
  %v248 = vld [vmem:[%s12] sm:$0x1]
  %v250 = vperm.slane %v248, 0
  %v252 = vperm.slane %v246, 0
  %vm254 = vcmask 261120
  %v255 = vsel %vm254, %v250, 0
  %257 = vmatpush.msra.mxu0 0.0
  %258 = vmatpush.msra.mxu0 0.0
  %259 = vmatpush.msra.mxu0 0.0
  %260 = vmatpush.msra.mxu0 0.0
  %261 = vmatpush.msra.mxu0 0.0
  %262 = vmatpush.msra.mxu0 0.0
  %263 = vmatpush.msra.mxu0 0.0
  %264 = vmatpush.msra.mxu0 0.0
  %265 = vmatpush.msra.mxu0 0.0
  %266 = vmatpush.msra.mxu0 0.0
  %267 = vmatpush.msra.mxu0 0.0
  %268 = vmatpush.msra.mxu0 0.0
  %269 = vmatpush.msra.mxu0 %v245
  %270 = vmatpush.msra.mxu0 %v244
  %271 = vmatpush.msra.mxu0 %v243
  %272 = vmatpush.msra.mxu0 %v242
  %273 = vmatmul.f32.gmra.mxu0 %v255
  %v274 = vpop.f32.mrf.mxu0
  %v275 = vadd.f32 %v252, %v274
  %276 = vmatmul.f32.gmra.mxu0 %v255
  %v277 = vpop.f32.mrf.mxu0
  %v278 = vadd.f32 %v252, %v277
  %279 = vdwg.mxu0
  %v282 = vrot.slane %v275, 1
  %v283 = vrot.slane %v275, 2
  %v284 = vrot.slane %v275, 3
  %v285 = vrot.slane %v275, 4
  %v286 = vrot.slane %v275, 5
  %v287 = vrot.slane %v275, 6
  %v288 = vrot.slane %v275, 7
  %v289 = vrot.slane %v278, 1
  %v290 = vrot.slane %v278, 2
  %v291 = vrot.slane %v278, 3
  %v292 = vrot.slane %v278, 4
  %v293 = vrot.slane %v278, 5
  %v294 = vrot.slane %v278, 6
  %v295 = vrot.slane %v278, 7
  %v296 = vperm.slane %v275, 0
  %v297 = vperm.slane %v282, 0
  %v298 = vperm.slane %v283, 0
  %v299 = vperm.slane %v284, 0
  %v300 = vperm.slane %v285, 0
  %v301 = vperm.slane %v286, 0
  %v302 = vperm.slane %v287, 0
  %v303 = vperm.slane %v288, 0
  %v304 = vperm.slane %v278, 0
  %v305 = vperm.slane %v289, 0
  %v306 = vperm.slane %v290, 0
  %v307 = vperm.slane %v291, 0
  %v308 = vperm.slane %v292, 0
  %v309 = vperm.slane %v293, 0
  %v310 = vperm.slane %v294, 0
  %v311 = vperm.slane %v295, 0
  %v328 = vadd.f32 %v296, %v172
  %v329 = vadd.f32 %v297, %v173
  %v330 = vadd.f32 %v298, %v174
  %v331 = vadd.f32 %v299, %v175
  %v332 = vadd.f32 %v300, %v176
  %v333 = vadd.f32 %v301, %v177
  %v334 = vadd.f32 %v302, %v178
  %v335 = vadd.f32 %v303, %v179
  %v336 = vadd.f32 %v304, %v180
  %v337 = vadd.f32 %v305, %v181
  %v338 = vadd.f32 %v306, %v182
  %v339 = vadd.f32 %v307, %v183
  %v340 = vadd.f32 %v308, %v184
  %v341 = vadd.f32 %v309, %v185
  %v342 = vadd.f32 %v310, %v186
  %v343 = vadd.f32 %v311, %v187
  %v344 = vtanh.pop %v328
  %v345 = vtanh.pop %v329
  %v346 = vtanh.pop %v330
  %v347 = vtanh.pop %v331
  %v348 = vtanh.pop %v332
  %v349 = vtanh.pop %v333
  %v350 = vtanh.pop %v334
  %v351 = vtanh.pop %v335
  %v352 = vtanh.pop %v336
  %v353 = vtanh.pop %v337
  %v354 = vtanh.pop %v338
  %v355 = vtanh.pop %v339
  %v356 = vtanh.pop %v340
  %v357 = vtanh.pop %v341
  %v358 = vtanh.pop %v342
  %v359 = vtanh.pop %v343
  %v361 = vperm.slane %v247, 0
  %v363 = vmul.f32 %v361, %v344
  %v364 = vmul.f32 %v361, %v345
  %v365 = vmul.f32 %v361, %v346
  %v366 = vmul.f32 %v361, %v347
  %v367 = vmul.f32 %v361, %v348
  %v368 = vmul.f32 %v361, %v349
  %v369 = vmul.f32 %v361, %v350
  %v370 = vmul.f32 %v361, %v351
  %v371 = vmul.f32 %v361, %v352
  %v372 = vmul.f32 %v361, %v353
  %v373 = vmul.f32 %v361, %v354
  %v374 = vmul.f32 %v361, %v355
  %v375 = vmul.f32 %v361, %v356
  %v376 = vmul.f32 %v361, %v357
  %v377 = vmul.f32 %v361, %v358
  %v378 = vmul.f32 %v361, %v359
  %v379 = vsel %vm254, %v363, 0.0
  %380 = vadd.xlane.f32.xlu0 %v379
  %v381 = vpop.xlane.xlu0 %380
  %v382 = vsel %vm254, %v364, 0.0
  %383 = vadd.xlane.f32.xlu0 %v382
  %v384 = vpop.xlane.xlu0 %383
  %v385 = vsel %vm254, %v365, 0.0
  %386 = vadd.xlane.f32.xlu0 %v385
  %v387 = vpop.xlane.xlu0 %386
  %v388 = vsel %vm254, %v366, 0.0
  %389 = vadd.xlane.f32.xlu0 %v388
  %v390 = vpop.xlane.xlu0 %389
  %v391 = vsel %vm254, %v367, 0.0
  %392 = vadd.xlane.f32.xlu0 %v391
  %v393 = vpop.xlane.xlu0 %392
  %v394 = vsel %vm254, %v368, 0.0
  %395 = vadd.xlane.f32.xlu0 %v394
  %v396 = vpop.xlane.xlu0 %395
  %v397 = vsel %vm254, %v369, 0.0
  %398 = vadd.xlane.f32.xlu0 %v397
  %v399 = vpop.xlane.xlu0 %398
  %v400 = vsel %vm254, %v370, 0.0
  %401 = vadd.xlane.f32.xlu0 %v400
  %v402 = vpop.xlane.xlu0 %401
  %v403 = vsel %vm254, %v371, 0.0
  %404 = vadd.xlane.f32.xlu0 %v403
  %v405 = vpop.xlane.xlu0 %404
  %v406 = vsel %vm254, %v372, 0.0
  %407 = vadd.xlane.f32.xlu0 %v406
  %v408 = vpop.xlane.xlu0 %407
  %v409 = vsel %vm254, %v373, 0.0
  %410 = vadd.xlane.f32.xlu0 %v409
  %v411 = vpop.xlane.xlu0 %410
  %v412 = vsel %vm254, %v374, 0.0
  %413 = vadd.xlane.f32.xlu0 %v412
  %v414 = vpop.xlane.xlu0 %413
  %v415 = vsel %vm254, %v375, 0.0
  %416 = vadd.xlane.f32.xlu0 %v415
  %v417 = vpop.xlane.xlu0 %416
  %v418 = vsel %vm254, %v376, 0.0
  %419 = vadd.xlane.f32.xlu0 %v418
  %v420 = vpop.xlane.xlu0 %419
  %v421 = vsel %vm254, %v377, 0.0
  %422 = vadd.xlane.f32.xlu0 %v421
  %v423 = vpop.xlane.xlu0 %422
  %v424 = vsel %vm254, %v378, 0.0
  %425 = vadd.xlane.f32.xlu0 %v424
  %v426 = vpop.xlane.xlu0 %425
  %v429 = vperm.slane %v240, 0
  %v430 = vlaneseq
  %v431 = vshrl.u32 %v430, 7
  %433 = vset.pattern.permute.xlu0 %v431
  %434 = vperm.xlu0 %433, %v429
  %v435 = vpop.permute.xlu0 %434
  %v436 = vperm.slane %v240, 1
  %v437 = vlaneseq
  %v438 = vshrl.u32 %v437, 7
  %440 = vset.pattern.permute.xlu0 %v438
  %441 = vperm.xlu0 %440, %v436
  %v442 = vpop.permute.xlu0 %441
  %v443 = vperm.slane %v240, 2
  %v444 = vlaneseq
  %v445 = vshrl.u32 %v444, 7
  %447 = vset.pattern.permute.xlu0 %v445
  %448 = vperm.xlu0 %447, %v443
  %v449 = vpop.permute.xlu0 %448
  %v450 = vperm.slane %v240, 3
  %v451 = vlaneseq
  %v452 = vshrl.u32 %v451, 7
  %454 = vset.pattern.permute.xlu0 %v452
  %455 = vperm.xlu0 %454, %v450
  %v456 = vpop.permute.xlu0 %455
  %v457 = vperm.slane %v240, 4
  %v458 = vlaneseq
  %v459 = vshrl.u32 %v458, 7
  %461 = vset.pattern.permute.xlu0 %v459
  %462 = vperm.xlu0 %461, %v457
  %v463 = vpop.permute.xlu0 %462
  %v464 = vperm.slane %v240, 5
  %v465 = vlaneseq
  %v466 = vshrl.u32 %v465, 7
  %468 = vset.pattern.permute.xlu0 %v466
  %469 = vperm.xlu0 %468, %v464
  %v470 = vpop.permute.xlu0 %469
  %v471 = vperm.slane %v240, 6
  %v472 = vlaneseq
  %v473 = vshrl.u32 %v472, 7
  %475 = vset.pattern.permute.xlu0 %v473
  %476 = vperm.xlu0 %475, %v471
  %v477 = vpop.permute.xlu0 %476
  %v478 = vperm.slane %v240, 7
  %v479 = vlaneseq
  %v480 = vshrl.u32 %v479, 7
  %482 = vset.pattern.permute.xlu0 %v480
  %483 = vperm.xlu0 %482, %v478
  %v484 = vpop.permute.xlu0 %483
  %v485 = vperm.slane %v241, 0
  %v486 = vlaneseq
  %v487 = vshrl.u32 %v486, 7
  %489 = vset.pattern.permute.xlu0 %v487
  %490 = vperm.xlu0 %489, %v485
  %v491 = vpop.permute.xlu0 %490
  %v492 = vperm.slane %v241, 1
  %v493 = vlaneseq
  %v494 = vshrl.u32 %v493, 7
  %496 = vset.pattern.permute.xlu0 %v494
  %497 = vperm.xlu0 %496, %v492
  %v498 = vpop.permute.xlu0 %497
  %v499 = vperm.slane %v241, 2
  %v500 = vlaneseq
  %v501 = vshrl.u32 %v500, 7
  %503 = vset.pattern.permute.xlu0 %v501
  %504 = vperm.xlu0 %503, %v499
  %v505 = vpop.permute.xlu0 %504
  %v506 = vperm.slane %v241, 3
  %v507 = vlaneseq
  %v508 = vshrl.u32 %v507, 7
  %510 = vset.pattern.permute.xlu0 %v508
  %511 = vperm.xlu0 %510, %v506
  %v512 = vpop.permute.xlu0 %511
  %v513 = vperm.slane %v241, 4
  %v514 = vlaneseq
  %v515 = vshrl.u32 %v514, 7
  %517 = vset.pattern.permute.xlu0 %v515
  %518 = vperm.xlu0 %517, %v513
  %v519 = vpop.permute.xlu0 %518
  %v520 = vperm.slane %v241, 5
  %v521 = vlaneseq
  %v522 = vshrl.u32 %v521, 7
  %524 = vset.pattern.permute.xlu0 %v522
  %525 = vperm.xlu0 %524, %v520
  %v526 = vpop.permute.xlu0 %525
  %v527 = vperm.slane %v241, 6
  %v528 = vlaneseq
  %v529 = vshrl.u32 %v528, 7
  %531 = vset.pattern.permute.xlu0 %v529
  %532 = vperm.xlu0 %531, %v527
  %v533 = vpop.permute.xlu0 %532
  %v534 = vperm.slane %v241, 7
  %v535 = vlaneseq
  %v536 = vshrl.u32 %v535, 7
  %538 = vset.pattern.permute.xlu0 %v536
  %539 = vperm.xlu0 %538, %v534
  %v540 = vpop.permute.xlu0 %539
  %v557 = vadd.f32 %v381, %v435
  %v558 = vadd.f32 %v384, %v442
  %v559 = vadd.f32 %v387, %v449
  %v560 = vadd.f32 %v390, %v456
  %v561 = vadd.f32 %v393, %v463
  %v562 = vadd.f32 %v396, %v470
  %v563 = vadd.f32 %v399, %v477
  %v564 = vadd.f32 %v402, %v484
  %v565 = vadd.f32 %v405, %v491
  %v566 = vadd.f32 %v408, %v498
  %v567 = vadd.f32 %v411, %v505
  %v568 = vadd.f32 %v414, %v512
  %v569 = vadd.f32 %v417, %v519
  %v570 = vadd.f32 %v420, %v526
  %v571 = vadd.f32 %v423, %v533
  %v572 = vadd.f32 %v426, %v540
  %589 = vset.pattern.permute.xlu0 0
  %590 = vperm.xlu0 %589, %v557
  %v591 = vpop.permute.xlu0 %590
  %592 = vset.pattern.permute.xlu0 0
  %593 = vperm.xlu0 %592, %v558
  %v594 = vpop.permute.xlu0 %593
  %595 = vset.pattern.permute.xlu0 0
  %596 = vperm.xlu0 %595, %v559
  %v597 = vpop.permute.xlu0 %596
  %598 = vset.pattern.permute.xlu0 0
  %599 = vperm.xlu0 %598, %v560
  %v600 = vpop.permute.xlu0 %599
  %601 = vset.pattern.permute.xlu0 0
  %602 = vperm.xlu0 %601, %v561
  %v603 = vpop.permute.xlu0 %602
  %604 = vset.pattern.permute.xlu0 0
  %605 = vperm.xlu0 %604, %v562
  %v606 = vpop.permute.xlu0 %605
  %607 = vset.pattern.permute.xlu0 0
  %608 = vperm.xlu0 %607, %v563
  %v609 = vpop.permute.xlu0 %608
  %610 = vset.pattern.permute.xlu0 0
  %611 = vperm.xlu0 %610, %v564
  %v612 = vpop.permute.xlu0 %611
  %613 = vset.pattern.permute.xlu0 0
  %614 = vperm.xlu0 %613, %v565
  %v615 = vpop.permute.xlu0 %614
  %616 = vset.pattern.permute.xlu0 0
  %617 = vperm.xlu0 %616, %v566
  %v618 = vpop.permute.xlu0 %617
  %619 = vset.pattern.permute.xlu0 0
  %620 = vperm.xlu0 %619, %v567
  %v621 = vpop.permute.xlu0 %620
  %622 = vset.pattern.permute.xlu0 0
  %623 = vperm.xlu0 %622, %v568
  %v624 = vpop.permute.xlu0 %623
  %625 = vset.pattern.permute.xlu0 0
  %626 = vperm.xlu0 %625, %v569
  %v627 = vpop.permute.xlu0 %626
  %628 = vset.pattern.permute.xlu0 0
  %629 = vperm.xlu0 %628, %v570
  %v630 = vpop.permute.xlu0 %629
  %631 = vset.pattern.permute.xlu0 0
  %632 = vperm.xlu0 %631, %v571
  %v633 = vpop.permute.xlu0 %632
  %634 = vset.pattern.permute.xlu0 0
  %635 = vperm.xlu0 %634, %v572
  %v636 = vpop.permute.xlu0 %635
  %v637 = vlaneseq
  %v638 = vand.u32 %v637, 127
  %v639 = vperm.slane %v591, %v638
  %v640 = vperm.slane %v594, %v638
  %v641 = vperm.slane %v597, %v638
  %v642 = vperm.slane %v600, %v638
  %v643 = vperm.slane %v603, %v638
  %v644 = vperm.slane %v606, %v638
  %v645 = vperm.slane %v609, %v638
  %v646 = vperm.slane %v612, %v638
  %v647 = vperm.slane %v615, %v638
  %v648 = vperm.slane %v618, %v638
  %v649 = vperm.slane %v621, %v638
  %v650 = vperm.slane %v624, %v638
  %v651 = vperm.slane %v627, %v638
  %v652 = vperm.slane %v630, %v638
  %v653 = vperm.slane %v633, %v638
  %v654 = vperm.slane %v636, %v638
  %vm655 = vcmask 1041409
  %v656 = vsel %vm655, %v640, %v639
  %vm657 = vcmask 1042434
  %v658 = vsel %vm657, %v641, %v656
  %vm659 = vcmask 1043459
  %v660 = vsel %vm659, %v642, %v658
  %vm661 = vcmask 1044484
  %v662 = vsel %vm661, %v643, %v660
  %vm663 = vcmask 1045509
  %v664 = vsel %vm663, %v644, %v662
  %vm665 = vcmask 1046534
  %v666 = vsel %vm665, %v645, %v664
  %vm667 = vcmask 1047559
  %v668 = vsel %vm667, %v646, %v666
  %v669 = vsel %vm655, %v648, %v647
  %v670 = vsel %vm657, %v649, %v669
  %v671 = vsel %vm659, %v650, %v670
  %v672 = vsel %vm661, %v651, %v671
  %v673 = vsel %vm663, %v652, %v672
  %v674 = vsel %vm665, %v653, %v673
  %v675 = vsel %vm667, %v654, %v674
  %v678 = vsel %vm49, %v668, -inf
  %679 = vmax.xlane.f32.xlu0 %v678
  %v680 = vpop.xlane.xlu0 %679
  %v681 = vsel %vm49, %v675, -inf
  %682 = vmax.xlane.f32.xlu0 %v681
  %v683 = vpop.xlane.xlu0 %682
  %v686 = vperm.slane %v680, 0
  %v687 = vperm.slane %v680, 1
  %v688 = vperm.slane %v680, 2
  %v689 = vperm.slane %v680, 3
  %v690 = vperm.slane %v680, 4
  %v691 = vperm.slane %v680, 5
  %v692 = vperm.slane %v680, 6
  %v693 = vperm.slane %v680, 7
  %v694 = vperm.slane %v683, 0
  %v695 = vperm.slane %v683, 1
  %v696 = vperm.slane %v683, 2
  %v697 = vperm.slane %v683, 3
  %v698 = vperm.slane %v683, 4
  %v699 = vperm.slane %v683, 5
  %v700 = vperm.slane %v683, 6
  %v701 = vperm.slane %v683, 7
  %v718 = vsub.f32 %v557, %v686
  %v719 = vsub.f32 %v558, %v687
  %v720 = vsub.f32 %v559, %v688
  %v721 = vsub.f32 %v560, %v689
  %v722 = vsub.f32 %v561, %v690
  %v723 = vsub.f32 %v562, %v691
  %v724 = vsub.f32 %v563, %v692
  %v725 = vsub.f32 %v564, %v693
  %v726 = vsub.f32 %v565, %v694
  %v727 = vsub.f32 %v566, %v695
  %v728 = vsub.f32 %v567, %v696
  %v729 = vsub.f32 %v568, %v697
  %v730 = vsub.f32 %v569, %v698
  %v731 = vsub.f32 %v570, %v699
  %v732 = vsub.f32 %v571, %v700
  %v733 = vsub.f32 %v572, %v701
  %v734 = vmul.f32 %v718, 0.6666667
  %v735 = vmul.f32 %v719, 0.6666667
  %v736 = vmul.f32 %v720, 0.6666667
  %v737 = vmul.f32 %v721, 0.6666667
  %v738 = vmul.f32 %v722, 0.6666667
  %v739 = vmul.f32 %v723, 0.6666667
  %v740 = vmul.f32 %v724, 0.6666667
  %v741 = vmul.f32 %v725, 0.6666667
  %v742 = vmul.f32 %v726, 0.6666667
  %v743 = vmul.f32 %v727, 0.6666667
  %v744 = vmul.f32 %v728, 0.6666667
  %v745 = vmul.f32 %v729, 0.6666667
  %v746 = vmul.f32 %v730, 0.6666667
  %v747 = vmul.f32 %v731, 0.6666667
  %v748 = vmul.f32 %v732, 0.6666667
  %v749 = vmul.f32 %v733, 0.6666667
  %v750 = vmul.f32 %v734, 1.442695
  %v751 = vpow.pop %v750
  %v752 = vmul.f32 %v735, 1.442695
  %v753 = vpow.pop %v752
  %v754 = vmul.f32 %v736, 1.442695
  %v755 = vpow.pop %v754
  %v756 = vmul.f32 %v737, 1.442695
  %v757 = vpow.pop %v756
  %v758 = vmul.f32 %v738, 1.442695
  %v759 = vpow.pop %v758
  %v760 = vmul.f32 %v739, 1.442695
  %v761 = vpow.pop %v760
  %v762 = vmul.f32 %v740, 1.442695
  %v763 = vpow.pop %v762
  %v764 = vmul.f32 %v741, 1.442695
  %v765 = vpow.pop %v764
  %v766 = vmul.f32 %v742, 1.442695
  %v767 = vpow.pop %v766
  %v768 = vmul.f32 %v743, 1.442695
  %v769 = vpow.pop %v768
  %v770 = vmul.f32 %v744, 1.442695
  %v771 = vpow.pop %v770
  %v772 = vmul.f32 %v745, 1.442695
  %v773 = vpow.pop %v772
  %v774 = vmul.f32 %v746, 1.442695
  %v775 = vpow.pop %v774
  %v776 = vmul.f32 %v747, 1.442695
  %v777 = vpow.pop %v776
  %v778 = vmul.f32 %v748, 1.442695
  %v779 = vpow.pop %v778
  %v780 = vmul.f32 %v749, 1.442695
  %v781 = vpow.pop %v780
  %798 = vset.pattern.permute.xlu0 0
  %799 = vperm.xlu0 %798, %v751
  %v800 = vpop.permute.xlu0 %799
  %801 = vset.pattern.permute.xlu0 0
  %802 = vperm.xlu0 %801, %v753
  %v803 = vpop.permute.xlu0 %802
  %804 = vset.pattern.permute.xlu0 0
  %805 = vperm.xlu0 %804, %v755
  %v806 = vpop.permute.xlu0 %805
  %807 = vset.pattern.permute.xlu0 0
  %808 = vperm.xlu0 %807, %v757
  %v809 = vpop.permute.xlu0 %808
  %810 = vset.pattern.permute.xlu0 0
  %811 = vperm.xlu0 %810, %v759
  %v812 = vpop.permute.xlu0 %811
  %813 = vset.pattern.permute.xlu0 0
  %814 = vperm.xlu0 %813, %v761
  %v815 = vpop.permute.xlu0 %814
  %816 = vset.pattern.permute.xlu0 0
  %817 = vperm.xlu0 %816, %v763
  %v818 = vpop.permute.xlu0 %817
  %819 = vset.pattern.permute.xlu0 0
  %820 = vperm.xlu0 %819, %v765
  %v821 = vpop.permute.xlu0 %820
  %822 = vset.pattern.permute.xlu0 0
  %823 = vperm.xlu0 %822, %v767
  %v824 = vpop.permute.xlu0 %823
  %825 = vset.pattern.permute.xlu0 0
  %826 = vperm.xlu0 %825, %v769
  %v827 = vpop.permute.xlu0 %826
  %828 = vset.pattern.permute.xlu0 0
  %829 = vperm.xlu0 %828, %v771
  %v830 = vpop.permute.xlu0 %829
  %831 = vset.pattern.permute.xlu0 0
  %832 = vperm.xlu0 %831, %v773
  %v833 = vpop.permute.xlu0 %832
  %834 = vset.pattern.permute.xlu0 0
  %835 = vperm.xlu0 %834, %v775
  %v836 = vpop.permute.xlu0 %835
  %837 = vset.pattern.permute.xlu0 0
  %838 = vperm.xlu0 %837, %v777
  %v839 = vpop.permute.xlu0 %838
  %840 = vset.pattern.permute.xlu0 0
  %841 = vperm.xlu0 %840, %v779
  %v842 = vpop.permute.xlu0 %841
  %843 = vset.pattern.permute.xlu0 0
  %844 = vperm.xlu0 %843, %v781
  %v845 = vpop.permute.xlu0 %844
  %v846 = vperm.slane %v800, %v638
  %v847 = vperm.slane %v803, %v638
  %v848 = vperm.slane %v806, %v638
  %v849 = vperm.slane %v809, %v638
  %v850 = vperm.slane %v812, %v638
  %v851 = vperm.slane %v815, %v638
  %v852 = vperm.slane %v818, %v638
  %v853 = vperm.slane %v821, %v638
  %v854 = vperm.slane %v824, %v638
  %v855 = vperm.slane %v827, %v638
  %v856 = vperm.slane %v830, %v638
  %v857 = vperm.slane %v833, %v638
  %v858 = vperm.slane %v836, %v638
  %v859 = vperm.slane %v839, %v638
  %v860 = vperm.slane %v842, %v638
  %v861 = vperm.slane %v845, %v638
  %v862 = vsel %vm655, %v847, %v846
  %v863 = vsel %vm657, %v848, %v862
  %v864 = vsel %vm659, %v849, %v863
  %v865 = vsel %vm661, %v850, %v864
  %v866 = vsel %vm663, %v851, %v865
  %v867 = vsel %vm665, %v852, %v866
  %v868 = vsel %vm667, %v853, %v867
  %v869 = vsel %vm655, %v855, %v854
  %v870 = vsel %vm657, %v856, %v869
  %v871 = vsel %vm659, %v857, %v870
  %v872 = vsel %vm661, %v858, %v871
  %v873 = vsel %vm663, %v859, %v872
  %v874 = vsel %vm665, %v860, %v873
  %v875 = vsel %vm667, %v861, %v874
  %v878 = vsel %vm49, %v868, 0.0
  %879 = vadd.xlane.f32.xlu0 %v878
  %v880 = vpop.xlane.xlu0 %879
  %v881 = vsel %vm49, %v875, 0.0
  %882 = vadd.xlane.f32.xlu0 %v881
  %v883 = vpop.xlane.xlu0 %882
  %v884 = vrcp.pop %v880
  %v885 = vrcp.pop %v883
  %v888 = vperm.slane %v884, 0
  %v889 = vperm.slane %v884, 1
  %v890 = vperm.slane %v884, 2
  %v891 = vperm.slane %v884, 3
  %v892 = vperm.slane %v884, 4
  %v893 = vperm.slane %v884, 5
  %v894 = vperm.slane %v884, 6
  %v895 = vperm.slane %v884, 7
  %v896 = vperm.slane %v885, 0
  %v897 = vperm.slane %v885, 1
  %v898 = vperm.slane %v885, 2
  %v899 = vperm.slane %v885, 3
  %v900 = vperm.slane %v885, 4
  %v901 = vperm.slane %v885, 5
  %v902 = vperm.slane %v885, 6
  %v903 = vperm.slane %v885, 7
  %v920 = vmul.f32 %v751, %v888
  %v921 = vmul.f32 %v753, %v889
  %v922 = vmul.f32 %v755, %v890
  %v923 = vmul.f32 %v757, %v891
  %v924 = vmul.f32 %v759, %v892
  %v925 = vmul.f32 %v761, %v893
  %v926 = vmul.f32 %v763, %v894
  %v927 = vmul.f32 %v765, %v895
  %v928 = vmul.f32 %v767, %v896
  %v929 = vmul.f32 %v769, %v897
  %v930 = vmul.f32 %v771, %v898
  %v931 = vmul.f32 %v773, %v899
  %v932 = vmul.f32 %v775, %v900
  %v933 = vmul.f32 %v777, %v901
  %v934 = vmul.f32 %v779, %v902
  %v935 = vmul.f32 %v781, %v903
  %937 = vset.pattern.permute.xlu0 0
  %938 = vperm.xlu0 %937, %v920
  %v939 = vpop.permute.xlu0 %938
  %v940 = vperm.slane %v939, %v638
  %v941 = vsel %vm49, %v940, 0
  %943 = vmatpush.msra.mxu0 0.0
  %944 = vmatpush.msra.mxu0 0.0
  %945 = vmatpush.msra.mxu0 0.0
  %946 = vmatpush.msra.mxu0 0.0
  %947 = vmatpush.msra.mxu0 0.0
  %948 = vmatpush.msra.mxu0 0.0
  %949 = vmatpush.msra.mxu0 0.0
  %950 = vmatpush.msra.mxu0 0.0
  %951 = vmatpush.msra.mxu0 0.0
  %952 = vmatpush.msra.mxu0 0.0
  %953 = vmatpush.msra.mxu0 0.0
  %954 = vmatpush.msra.mxu0 0.0
  %955 = vmatpush.msra.mxu0 0.0
  %956 = vmatpush.msra.mxu0 0.0
  %957 = vmatpush.msra.mxu0 0.0
  %958 = vmatpush.msra.mxu0 %v172
  %959 = vmatmul.f32.gmra.mxu0 %v941
  %v960 = vpop.f32.mrf.mxu0
  %v961 = vadd.f32 0.0, %v960
  %962 = vdwg.mxu0
  %964 = vset.pattern.permute.xlu0 0
  %965 = vperm.xlu0 %964, %v921
  %v966 = vpop.permute.xlu0 %965
  %v967 = vperm.slane %v966, %v638
  %v968 = vsel %vm49, %v967, 0
  %970 = vmatpush.msra.mxu0 0.0
  %971 = vmatpush.msra.mxu0 0.0
  %972 = vmatpush.msra.mxu0 0.0
  %973 = vmatpush.msra.mxu0 0.0
  %974 = vmatpush.msra.mxu0 0.0
  %975 = vmatpush.msra.mxu0 0.0
  %976 = vmatpush.msra.mxu0 0.0
  %977 = vmatpush.msra.mxu0 0.0
  %978 = vmatpush.msra.mxu0 0.0
  %979 = vmatpush.msra.mxu0 0.0
  %980 = vmatpush.msra.mxu0 0.0
  %981 = vmatpush.msra.mxu0 0.0
  %982 = vmatpush.msra.mxu0 0.0
  %983 = vmatpush.msra.mxu0 0.0
  %984 = vmatpush.msra.mxu0 0.0
  %985 = vmatpush.msra.mxu0 %v173
  %986 = vmatmul.f32.gmra.mxu0 %v968
  %v987 = vpop.f32.mrf.mxu0
  %v988 = vadd.f32 0.0, %v987
  %989 = vdwg.mxu0
  %991 = vset.pattern.permute.xlu0 0
  %992 = vperm.xlu0 %991, %v922
  %v993 = vpop.permute.xlu0 %992
  %v994 = vperm.slane %v993, %v638
  %v995 = vsel %vm49, %v994, 0
  %997 = vmatpush.msra.mxu0 0.0
  %998 = vmatpush.msra.mxu0 0.0
  %999 = vmatpush.msra.mxu0 0.0
  %1000 = vmatpush.msra.mxu0 0.0
  %1001 = vmatpush.msra.mxu0 0.0
  %1002 = vmatpush.msra.mxu0 0.0
  %1003 = vmatpush.msra.mxu0 0.0
  %1004 = vmatpush.msra.mxu0 0.0
  %1005 = vmatpush.msra.mxu0 0.0
  %1006 = vmatpush.msra.mxu0 0.0
  %1007 = vmatpush.msra.mxu0 0.0
  %1008 = vmatpush.msra.mxu0 0.0
  %1009 = vmatpush.msra.mxu0 0.0
  %1010 = vmatpush.msra.mxu0 0.0
  %1011 = vmatpush.msra.mxu0 0.0
  %1012 = vmatpush.msra.mxu0 %v174
  %1013 = vmatmul.f32.gmra.mxu0 %v995
  %v1014 = vpop.f32.mrf.mxu0
  %v1015 = vadd.f32 0.0, %v1014
  %1016 = vdwg.mxu0
  %1018 = vset.pattern.permute.xlu0 0
  %1019 = vperm.xlu0 %1018, %v923
  %v1020 = vpop.permute.xlu0 %1019
  %v1021 = vperm.slane %v1020, %v638
  %v1022 = vsel %vm49, %v1021, 0
  %1024 = vmatpush.msra.mxu0 0.0
  %1025 = vmatpush.msra.mxu0 0.0
  %1026 = vmatpush.msra.mxu0 0.0
  %1027 = vmatpush.msra.mxu0 0.0
  %1028 = vmatpush.msra.mxu0 0.0
  %1029 = vmatpush.msra.mxu0 0.0
  %1030 = vmatpush.msra.mxu0 0.0
  %1031 = vmatpush.msra.mxu0 0.0
  %1032 = vmatpush.msra.mxu0 0.0
  %1033 = vmatpush.msra.mxu0 0.0
  %1034 = vmatpush.msra.mxu0 0.0
  %1035 = vmatpush.msra.mxu0 0.0
  %1036 = vmatpush.msra.mxu0 0.0
  %1037 = vmatpush.msra.mxu0 0.0
  %1038 = vmatpush.msra.mxu0 0.0
  %1039 = vmatpush.msra.mxu0 %v175
  %1040 = vmatmul.f32.gmra.mxu0 %v1022
  %v1041 = vpop.f32.mrf.mxu0
  %v1042 = vadd.f32 0.0, %v1041
  %1043 = vdwg.mxu0
  %1045 = vset.pattern.permute.xlu0 0
  %1046 = vperm.xlu0 %1045, %v924
  %v1047 = vpop.permute.xlu0 %1046
  %v1048 = vperm.slane %v1047, %v638
  %v1049 = vsel %vm49, %v1048, 0
  %1051 = vmatpush.msra.mxu0 0.0
  %1052 = vmatpush.msra.mxu0 0.0
  %1053 = vmatpush.msra.mxu0 0.0
  %1054 = vmatpush.msra.mxu0 0.0
  %1055 = vmatpush.msra.mxu0 0.0
  %1056 = vmatpush.msra.mxu0 0.0
  %1057 = vmatpush.msra.mxu0 0.0
  %1058 = vmatpush.msra.mxu0 0.0
  %1059 = vmatpush.msra.mxu0 0.0
  %1060 = vmatpush.msra.mxu0 0.0
  %1061 = vmatpush.msra.mxu0 0.0
  %1062 = vmatpush.msra.mxu0 0.0
  %1063 = vmatpush.msra.mxu0 0.0
  %1064 = vmatpush.msra.mxu0 0.0
  %1065 = vmatpush.msra.mxu0 0.0
  %1066 = vmatpush.msra.mxu0 %v176
  %1067 = vmatmul.f32.gmra.mxu0 %v1049
  %v1068 = vpop.f32.mrf.mxu0
  %v1069 = vadd.f32 0.0, %v1068
  %1070 = vdwg.mxu0
  %1072 = vset.pattern.permute.xlu0 0
  %1073 = vperm.xlu0 %1072, %v925
  %v1074 = vpop.permute.xlu0 %1073
  %v1075 = vperm.slane %v1074, %v638
  %v1076 = vsel %vm49, %v1075, 0
  %1078 = vmatpush.msra.mxu0 0.0
  %1079 = vmatpush.msra.mxu0 0.0
  %1080 = vmatpush.msra.mxu0 0.0
  %1081 = vmatpush.msra.mxu0 0.0
  %1082 = vmatpush.msra.mxu0 0.0
  %1083 = vmatpush.msra.mxu0 0.0
  %1084 = vmatpush.msra.mxu0 0.0
  %1085 = vmatpush.msra.mxu0 0.0
  %1086 = vmatpush.msra.mxu0 0.0
  %1087 = vmatpush.msra.mxu0 0.0
  %1088 = vmatpush.msra.mxu0 0.0
  %1089 = vmatpush.msra.mxu0 0.0
  %1090 = vmatpush.msra.mxu0 0.0
  %1091 = vmatpush.msra.mxu0 0.0
  %1092 = vmatpush.msra.mxu0 0.0
  %1093 = vmatpush.msra.mxu0 %v177
  %1094 = vmatmul.f32.gmra.mxu0 %v1076
  %v1095 = vpop.f32.mrf.mxu0
  %v1096 = vadd.f32 0.0, %v1095
  %1097 = vdwg.mxu0
  %1099 = vset.pattern.permute.xlu0 0
  %1100 = vperm.xlu0 %1099, %v926
  %v1101 = vpop.permute.xlu0 %1100
  %v1102 = vperm.slane %v1101, %v638
  %v1103 = vsel %vm49, %v1102, 0
  %1105 = vmatpush.msra.mxu0 0.0
  %1106 = vmatpush.msra.mxu0 0.0
  %1107 = vmatpush.msra.mxu0 0.0
  %1108 = vmatpush.msra.mxu0 0.0
  %1109 = vmatpush.msra.mxu0 0.0
  %1110 = vmatpush.msra.mxu0 0.0
  %1111 = vmatpush.msra.mxu0 0.0
  %1112 = vmatpush.msra.mxu0 0.0
  %1113 = vmatpush.msra.mxu0 0.0
  %1114 = vmatpush.msra.mxu0 0.0
  %1115 = vmatpush.msra.mxu0 0.0
  %1116 = vmatpush.msra.mxu0 0.0
  %1117 = vmatpush.msra.mxu0 0.0
  %1118 = vmatpush.msra.mxu0 0.0
  %1119 = vmatpush.msra.mxu0 0.0
  %1120 = vmatpush.msra.mxu0 %v178
  %1121 = vmatmul.f32.gmra.mxu0 %v1103
  %v1122 = vpop.f32.mrf.mxu0
  %v1123 = vadd.f32 0.0, %v1122
  %1124 = vdwg.mxu0
  %1126 = vset.pattern.permute.xlu0 0
  %1127 = vperm.xlu0 %1126, %v927
  %v1128 = vpop.permute.xlu0 %1127
  %v1129 = vperm.slane %v1128, %v638
  %v1130 = vsel %vm49, %v1129, 0
  %1132 = vmatpush.msra.mxu0 0.0
  %1133 = vmatpush.msra.mxu0 0.0
  %1134 = vmatpush.msra.mxu0 0.0
  %1135 = vmatpush.msra.mxu0 0.0
  %1136 = vmatpush.msra.mxu0 0.0
  %1137 = vmatpush.msra.mxu0 0.0
  %1138 = vmatpush.msra.mxu0 0.0
  %1139 = vmatpush.msra.mxu0 0.0
  %1140 = vmatpush.msra.mxu0 0.0
  %1141 = vmatpush.msra.mxu0 0.0
  %1142 = vmatpush.msra.mxu0 0.0
  %1143 = vmatpush.msra.mxu0 0.0
  %1144 = vmatpush.msra.mxu0 0.0
  %1145 = vmatpush.msra.mxu0 0.0
  %1146 = vmatpush.msra.mxu0 0.0
  %1147 = vmatpush.msra.mxu0 %v179
  %1148 = vmatmul.f32.gmra.mxu0 %v1130
  %v1149 = vpop.f32.mrf.mxu0
  %v1150 = vadd.f32 0.0, %v1149
  %1151 = vdwg.mxu0
  %1153 = vset.pattern.permute.xlu0 0
  %1154 = vperm.xlu0 %1153, %v928
  %v1155 = vpop.permute.xlu0 %1154
  %v1156 = vperm.slane %v1155, %v638
  %v1157 = vsel %vm49, %v1156, 0
  %1159 = vmatpush.msra.mxu0 0.0
  %1160 = vmatpush.msra.mxu0 0.0
  %1161 = vmatpush.msra.mxu0 0.0
  %1162 = vmatpush.msra.mxu0 0.0
  %1163 = vmatpush.msra.mxu0 0.0
  %1164 = vmatpush.msra.mxu0 0.0
  %1165 = vmatpush.msra.mxu0 0.0
  %1166 = vmatpush.msra.mxu0 0.0
  %1167 = vmatpush.msra.mxu0 0.0
  %1168 = vmatpush.msra.mxu0 0.0
  %1169 = vmatpush.msra.mxu0 0.0
  %1170 = vmatpush.msra.mxu0 0.0
  %1171 = vmatpush.msra.mxu0 0.0
  %1172 = vmatpush.msra.mxu0 0.0
  %1173 = vmatpush.msra.mxu0 0.0
  %1174 = vmatpush.msra.mxu0 %v180
  %1175 = vmatmul.f32.gmra.mxu0 %v1157
  %v1176 = vpop.f32.mrf.mxu0
  %v1177 = vadd.f32 0.0, %v1176
  %1178 = vdwg.mxu0
  %1180 = vset.pattern.permute.xlu0 0
  %1181 = vperm.xlu0 %1180, %v929
  %v1182 = vpop.permute.xlu0 %1181
  %v1183 = vperm.slane %v1182, %v638
  %v1184 = vsel %vm49, %v1183, 0
  %1186 = vmatpush.msra.mxu0 0.0
  %1187 = vmatpush.msra.mxu0 0.0
  %1188 = vmatpush.msra.mxu0 0.0
  %1189 = vmatpush.msra.mxu0 0.0
  %1190 = vmatpush.msra.mxu0 0.0
  %1191 = vmatpush.msra.mxu0 0.0
  %1192 = vmatpush.msra.mxu0 0.0
  %1193 = vmatpush.msra.mxu0 0.0
  %1194 = vmatpush.msra.mxu0 0.0
  %1195 = vmatpush.msra.mxu0 0.0
  %1196 = vmatpush.msra.mxu0 0.0
  %1197 = vmatpush.msra.mxu0 0.0
  %1198 = vmatpush.msra.mxu0 0.0
  %1199 = vmatpush.msra.mxu0 0.0
  %1200 = vmatpush.msra.mxu0 0.0
  %1201 = vmatpush.msra.mxu0 %v181
  %1202 = vmatmul.f32.gmra.mxu0 %v1184
  %v1203 = vpop.f32.mrf.mxu0
  %v1204 = vadd.f32 0.0, %v1203
  %1205 = vdwg.mxu0
  %1207 = vset.pattern.permute.xlu0 0
  %1208 = vperm.xlu0 %1207, %v930
  %v1209 = vpop.permute.xlu0 %1208
  %v1210 = vperm.slane %v1209, %v638
  %v1211 = vsel %vm49, %v1210, 0
  %1213 = vmatpush.msra.mxu0 0.0
  %1214 = vmatpush.msra.mxu0 0.0
  %1215 = vmatpush.msra.mxu0 0.0
  %1216 = vmatpush.msra.mxu0 0.0
  %1217 = vmatpush.msra.mxu0 0.0
  %1218 = vmatpush.msra.mxu0 0.0
  %1219 = vmatpush.msra.mxu0 0.0
  %1220 = vmatpush.msra.mxu0 0.0
  %1221 = vmatpush.msra.mxu0 0.0
  %1222 = vmatpush.msra.mxu0 0.0
  %1223 = vmatpush.msra.mxu0 0.0
  %1224 = vmatpush.msra.mxu0 0.0
  %1225 = vmatpush.msra.mxu0 0.0
  %1226 = vmatpush.msra.mxu0 0.0
  %1227 = vmatpush.msra.mxu0 0.0
  %1228 = vmatpush.msra.mxu0 %v182
  %1229 = vmatmul.f32.gmra.mxu0 %v1211
  %v1230 = vpop.f32.mrf.mxu0
  %v1231 = vadd.f32 0.0, %v1230
  %1232 = vdwg.mxu0
  %1234 = vset.pattern.permute.xlu0 0
  %1235 = vperm.xlu0 %1234, %v931
  %v1236 = vpop.permute.xlu0 %1235
  %v1237 = vperm.slane %v1236, %v638
  %v1238 = vsel %vm49, %v1237, 0
  %1240 = vmatpush.msra.mxu0 0.0
  %1241 = vmatpush.msra.mxu0 0.0
  %1242 = vmatpush.msra.mxu0 0.0
  %1243 = vmatpush.msra.mxu0 0.0
  %1244 = vmatpush.msra.mxu0 0.0
  %1245 = vmatpush.msra.mxu0 0.0
  %1246 = vmatpush.msra.mxu0 0.0
  %1247 = vmatpush.msra.mxu0 0.0
  %1248 = vmatpush.msra.mxu0 0.0
  %1249 = vmatpush.msra.mxu0 0.0
  %1250 = vmatpush.msra.mxu0 0.0
  %1251 = vmatpush.msra.mxu0 0.0
  %1252 = vmatpush.msra.mxu0 0.0
  %1253 = vmatpush.msra.mxu0 0.0
  %1254 = vmatpush.msra.mxu0 0.0
  %1255 = vmatpush.msra.mxu0 %v183
  %1256 = vmatmul.f32.gmra.mxu0 %v1238
  %v1257 = vpop.f32.mrf.mxu0
  %v1258 = vadd.f32 0.0, %v1257
  %1259 = vdwg.mxu0
  %1261 = vset.pattern.permute.xlu0 0
  %1262 = vperm.xlu0 %1261, %v932
  %v1263 = vpop.permute.xlu0 %1262
  %v1264 = vperm.slane %v1263, %v638
  %v1265 = vsel %vm49, %v1264, 0
  %1267 = vmatpush.msra.mxu0 0.0
  %1268 = vmatpush.msra.mxu0 0.0
  %1269 = vmatpush.msra.mxu0 0.0
  %1270 = vmatpush.msra.mxu0 0.0
  %1271 = vmatpush.msra.mxu0 0.0
  %1272 = vmatpush.msra.mxu0 0.0
  %1273 = vmatpush.msra.mxu0 0.0
  %1274 = vmatpush.msra.mxu0 0.0
  %1275 = vmatpush.msra.mxu0 0.0
  %1276 = vmatpush.msra.mxu0 0.0
  %1277 = vmatpush.msra.mxu0 0.0
  %1278 = vmatpush.msra.mxu0 0.0
  %1279 = vmatpush.msra.mxu0 0.0
  %1280 = vmatpush.msra.mxu0 0.0
  %1281 = vmatpush.msra.mxu0 0.0
  %1282 = vmatpush.msra.mxu0 %v184
  %1283 = vmatmul.f32.gmra.mxu0 %v1265
  %v1284 = vpop.f32.mrf.mxu0
  %v1285 = vadd.f32 0.0, %v1284
  %1286 = vdwg.mxu0
  %1288 = vset.pattern.permute.xlu0 0
  %1289 = vperm.xlu0 %1288, %v933
  %v1290 = vpop.permute.xlu0 %1289
  %v1291 = vperm.slane %v1290, %v638
  %v1292 = vsel %vm49, %v1291, 0
  %1294 = vmatpush.msra.mxu0 0.0
  %1295 = vmatpush.msra.mxu0 0.0
  %1296 = vmatpush.msra.mxu0 0.0
  %1297 = vmatpush.msra.mxu0 0.0
  %1298 = vmatpush.msra.mxu0 0.0
  %1299 = vmatpush.msra.mxu0 0.0
  %1300 = vmatpush.msra.mxu0 0.0
  %1301 = vmatpush.msra.mxu0 0.0
  %1302 = vmatpush.msra.mxu0 0.0
  %1303 = vmatpush.msra.mxu0 0.0
  %1304 = vmatpush.msra.mxu0 0.0
  %1305 = vmatpush.msra.mxu0 0.0
  %1306 = vmatpush.msra.mxu0 0.0
  %1307 = vmatpush.msra.mxu0 0.0
  %1308 = vmatpush.msra.mxu0 0.0
  %1309 = vmatpush.msra.mxu0 %v185
  %1310 = vmatmul.f32.gmra.mxu0 %v1292
  %v1311 = vpop.f32.mrf.mxu0
  %v1312 = vadd.f32 0.0, %v1311
  %1313 = vdwg.mxu0
  %1315 = vset.pattern.permute.xlu0 0
  %1316 = vperm.xlu0 %1315, %v934
  %v1317 = vpop.permute.xlu0 %1316
  %v1318 = vperm.slane %v1317, %v638
  %v1319 = vsel %vm49, %v1318, 0
  %1321 = vmatpush.msra.mxu0 0.0
  %1322 = vmatpush.msra.mxu0 0.0
  %1323 = vmatpush.msra.mxu0 0.0
  %1324 = vmatpush.msra.mxu0 0.0
  %1325 = vmatpush.msra.mxu0 0.0
  %1326 = vmatpush.msra.mxu0 0.0
  %1327 = vmatpush.msra.mxu0 0.0
  %1328 = vmatpush.msra.mxu0 0.0
  %1329 = vmatpush.msra.mxu0 0.0
  %1330 = vmatpush.msra.mxu0 0.0
  %1331 = vmatpush.msra.mxu0 0.0
  %1332 = vmatpush.msra.mxu0 0.0
  %1333 = vmatpush.msra.mxu0 0.0
  %1334 = vmatpush.msra.mxu0 0.0
  %1335 = vmatpush.msra.mxu0 0.0
  %1336 = vmatpush.msra.mxu0 %v186
  %1337 = vmatmul.f32.gmra.mxu0 %v1319
  %v1338 = vpop.f32.mrf.mxu0
  %v1339 = vadd.f32 0.0, %v1338
  %1340 = vdwg.mxu0
  %1342 = vset.pattern.permute.xlu0 0
  %1343 = vperm.xlu0 %1342, %v935
  %v1344 = vpop.permute.xlu0 %1343
  %v1345 = vperm.slane %v1344, %v638
  %v1346 = vsel %vm49, %v1345, 0
  %1348 = vmatpush.msra.mxu0 0.0
  %1349 = vmatpush.msra.mxu0 0.0
  %1350 = vmatpush.msra.mxu0 0.0
  %1351 = vmatpush.msra.mxu0 0.0
  %1352 = vmatpush.msra.mxu0 0.0
  %1353 = vmatpush.msra.mxu0 0.0
  %1354 = vmatpush.msra.mxu0 0.0
  %1355 = vmatpush.msra.mxu0 0.0
  %1356 = vmatpush.msra.mxu0 0.0
  %1357 = vmatpush.msra.mxu0 0.0
  %1358 = vmatpush.msra.mxu0 0.0
  %1359 = vmatpush.msra.mxu0 0.0
  %1360 = vmatpush.msra.mxu0 0.0
  %1361 = vmatpush.msra.mxu0 0.0
  %1362 = vmatpush.msra.mxu0 0.0
  %1363 = vmatpush.msra.mxu0 %v187
  %1364 = vmatmul.f32.gmra.mxu0 %v1346
  %v1365 = vpop.f32.mrf.mxu0
  %v1366 = vadd.f32 0.0, %v1365
  %1367 = vdwg.mxu0
  %v1384 = vrot.slane %v988, 7
  %v1385 = vsel %vm655, %v1384, %v961
  %v1386 = vrot.slane %v1015, 6
  %v1387 = vsel %vm657, %v1386, %v1385
  %v1388 = vrot.slane %v1042, 5
  %v1389 = vsel %vm659, %v1388, %v1387
  %v1390 = vrot.slane %v1069, 4
  %v1391 = vsel %vm661, %v1390, %v1389
  %v1392 = vrot.slane %v1096, 3
  %v1393 = vsel %vm663, %v1392, %v1391
  %v1394 = vrot.slane %v1123, 2
  %v1395 = vsel %vm665, %v1394, %v1393
  %v1396 = vrot.slane %v1150, 1
  %v1397 = vsel %vm667, %v1396, %v1395
  %v1398 = vrot.slane %v1204, 7
  %v1399 = vsel %vm655, %v1398, %v1177
  %v1400 = vrot.slane %v1231, 6
  %v1401 = vsel %vm657, %v1400, %v1399
  %v1402 = vrot.slane %v1258, 5
  %v1403 = vsel %vm659, %v1402, %v1401
  %v1404 = vrot.slane %v1285, 4
  %v1405 = vsel %vm661, %v1404, %v1403
  %v1406 = vrot.slane %v1312, 3
  %v1407 = vsel %vm663, %v1406, %v1405
  %v1408 = vrot.slane %v1339, 2
  %v1409 = vsel %vm665, %v1408, %v1407
  %v1410 = vrot.slane %v1366, 1
  %v1411 = vsel %vm667, %v1410, %v1409
  %v1412 = vsel %vm254, %v1397, 0
  %v1414 = vsel %vm254, %v1411, 0
  %1416 = vmatpush.msra.mxu0 0.0
  %1417 = vmatpush.msra.mxu0 0.0
  %1418 = vmatpush.msra.mxu0 0.0
  %1419 = vmatpush.msra.mxu0 0.0
  %1420 = vmatpush.msra.mxu0 0.0
  %1421 = vmatpush.msra.mxu0 0.0
  %1422 = vmatpush.msra.mxu0 0.0
  %1423 = vmatpush.msra.mxu0 0.0
  %1424 = vmatpush.msra.mxu0 0.0
  %1425 = vmatpush.msra.mxu0 0.0
  %1426 = vmatpush.msra.mxu0 0.0
  %1427 = vmatpush.msra.mxu0 0.0
  %1428 = vmatpush.msra.mxu0 %v245
  %1429 = vmatpush.msra.mxu0 %v244
  %1430 = vmatpush.msra.mxu0 %v243
  %1431 = vmatpush.msra.mxu0 %v242
  %1432 = vmatmul.f32.gmra.mxu0 %v1412
  %v1433 = vpop.f32.mrf.mxu0
  %v1434 = vadd.f32 %v252, %v1433
  %1435 = vmatmul.f32.gmra.mxu0 %v1414
  %v1436 = vpop.f32.mrf.mxu0
  %v1437 = vadd.f32 %v252, %v1436
  %1438 = vdwg.mxu0
  %v1441 = vrot.slane %v1434, 1
  %v1442 = vrot.slane %v1434, 2
  %v1443 = vrot.slane %v1434, 3
  %v1444 = vrot.slane %v1434, 4
  %v1445 = vrot.slane %v1434, 5
  %v1446 = vrot.slane %v1434, 6
  %v1447 = vrot.slane %v1434, 7
  %v1448 = vrot.slane %v1437, 1
  %v1449 = vrot.slane %v1437, 2
  %v1450 = vrot.slane %v1437, 3
  %v1451 = vrot.slane %v1437, 4
  %v1452 = vrot.slane %v1437, 5
  %v1453 = vrot.slane %v1437, 6
  %v1454 = vrot.slane %v1437, 7
  %v1455 = vperm.slane %v1434, 0
  %v1456 = vperm.slane %v1441, 0
  %v1457 = vperm.slane %v1442, 0
  %v1458 = vperm.slane %v1443, 0
  %v1459 = vperm.slane %v1444, 0
  %v1460 = vperm.slane %v1445, 0
  %v1461 = vperm.slane %v1446, 0
  %v1462 = vperm.slane %v1447, 0
  %v1463 = vperm.slane %v1437, 0
  %v1464 = vperm.slane %v1448, 0
  %v1465 = vperm.slane %v1449, 0
  %v1466 = vperm.slane %v1450, 0
  %v1467 = vperm.slane %v1451, 0
  %v1468 = vperm.slane %v1452, 0
  %v1469 = vperm.slane %v1453, 0
  %v1470 = vperm.slane %v1454, 0
  %v1487 = vadd.f32 %v1455, %v172
  %v1488 = vadd.f32 %v1456, %v173
  %v1489 = vadd.f32 %v1457, %v174
  %v1490 = vadd.f32 %v1458, %v175
  %v1491 = vadd.f32 %v1459, %v176
  %v1492 = vadd.f32 %v1460, %v177
  %v1493 = vadd.f32 %v1461, %v178
  %v1494 = vadd.f32 %v1462, %v179
  %v1495 = vadd.f32 %v1463, %v180
  %v1496 = vadd.f32 %v1464, %v181
  %v1497 = vadd.f32 %v1465, %v182
  %v1498 = vadd.f32 %v1466, %v183
  %v1499 = vadd.f32 %v1467, %v184
  %v1500 = vadd.f32 %v1468, %v185
  %v1501 = vadd.f32 %v1469, %v186
  %v1502 = vadd.f32 %v1470, %v187
  %v1503 = vtanh.pop %v1487
  %v1504 = vtanh.pop %v1488
  %v1505 = vtanh.pop %v1489
  %v1506 = vtanh.pop %v1490
  %v1507 = vtanh.pop %v1491
  %v1508 = vtanh.pop %v1492
  %v1509 = vtanh.pop %v1493
  %v1510 = vtanh.pop %v1494
  %v1511 = vtanh.pop %v1495
  %v1512 = vtanh.pop %v1496
  %v1513 = vtanh.pop %v1497
  %v1514 = vtanh.pop %v1498
  %v1515 = vtanh.pop %v1499
  %v1516 = vtanh.pop %v1500
  %v1517 = vtanh.pop %v1501
  %v1518 = vtanh.pop %v1502
  %v1519 = vmul.f32 %v361, %v1503
  %v1520 = vmul.f32 %v361, %v1504
  %v1521 = vmul.f32 %v361, %v1505
  %v1522 = vmul.f32 %v361, %v1506
  %v1523 = vmul.f32 %v361, %v1507
  %v1524 = vmul.f32 %v361, %v1508
  %v1525 = vmul.f32 %v361, %v1509
  %v1526 = vmul.f32 %v361, %v1510
  %v1527 = vmul.f32 %v361, %v1511
  %v1528 = vmul.f32 %v361, %v1512
  %v1529 = vmul.f32 %v361, %v1513
  %v1530 = vmul.f32 %v361, %v1514
  %v1531 = vmul.f32 %v361, %v1515
  %v1532 = vmul.f32 %v361, %v1516
  %v1533 = vmul.f32 %v361, %v1517
  %v1534 = vmul.f32 %v361, %v1518
  %v1535 = vsel %vm254, %v1519, 0.0
  %1536 = vadd.xlane.f32.xlu0 %v1535
  %v1537 = vpop.xlane.xlu0 %1536
  %v1538 = vsel %vm254, %v1520, 0.0
  %1539 = vadd.xlane.f32.xlu0 %v1538
  %v1540 = vpop.xlane.xlu0 %1539
  %v1541 = vsel %vm254, %v1521, 0.0
  %1542 = vadd.xlane.f32.xlu0 %v1541
  %v1543 = vpop.xlane.xlu0 %1542
  %v1544 = vsel %vm254, %v1522, 0.0
  %1545 = vadd.xlane.f32.xlu0 %v1544
  %v1546 = vpop.xlane.xlu0 %1545
  %v1547 = vsel %vm254, %v1523, 0.0
  %1548 = vadd.xlane.f32.xlu0 %v1547
  %v1549 = vpop.xlane.xlu0 %1548
  %v1550 = vsel %vm254, %v1524, 0.0
  %1551 = vadd.xlane.f32.xlu0 %v1550
  %v1552 = vpop.xlane.xlu0 %1551
  %v1553 = vsel %vm254, %v1525, 0.0
  %1554 = vadd.xlane.f32.xlu0 %v1553
  %v1555 = vpop.xlane.xlu0 %1554
  %v1556 = vsel %vm254, %v1526, 0.0
  %1557 = vadd.xlane.f32.xlu0 %v1556
  %v1558 = vpop.xlane.xlu0 %1557
  %v1559 = vsel %vm254, %v1527, 0.0
  %1560 = vadd.xlane.f32.xlu0 %v1559
  %v1561 = vpop.xlane.xlu0 %1560
  %v1562 = vsel %vm254, %v1528, 0.0
  %1563 = vadd.xlane.f32.xlu0 %v1562
  %v1564 = vpop.xlane.xlu0 %1563
  %v1565 = vsel %vm254, %v1529, 0.0
  %1566 = vadd.xlane.f32.xlu0 %v1565
  %v1567 = vpop.xlane.xlu0 %1566
  %v1568 = vsel %vm254, %v1530, 0.0
  %1569 = vadd.xlane.f32.xlu0 %v1568
  %v1570 = vpop.xlane.xlu0 %1569
  %v1571 = vsel %vm254, %v1531, 0.0
  %1572 = vadd.xlane.f32.xlu0 %v1571
  %v1573 = vpop.xlane.xlu0 %1572
  %v1574 = vsel %vm254, %v1532, 0.0
  %1575 = vadd.xlane.f32.xlu0 %v1574
  %v1576 = vpop.xlane.xlu0 %1575
  %v1577 = vsel %vm254, %v1533, 0.0
  %1578 = vadd.xlane.f32.xlu0 %v1577
  %v1579 = vpop.xlane.xlu0 %1578
  %v1580 = vsel %vm254, %v1534, 0.0
  %1581 = vadd.xlane.f32.xlu0 %v1580
  %v1582 = vpop.xlane.xlu0 %1581
  %v1583 = vadd.f32 %v1537, %v435
  %v1584 = vadd.f32 %v1540, %v442
  %v1585 = vadd.f32 %v1543, %v449
  %v1586 = vadd.f32 %v1546, %v456
  %v1587 = vadd.f32 %v1549, %v463
  %v1588 = vadd.f32 %v1552, %v470
  %v1589 = vadd.f32 %v1555, %v477
  %v1590 = vadd.f32 %v1558, %v484
  %v1591 = vadd.f32 %v1561, %v491
  %v1592 = vadd.f32 %v1564, %v498
  %v1593 = vadd.f32 %v1567, %v505
  %v1594 = vadd.f32 %v1570, %v512
  %v1595 = vadd.f32 %v1573, %v519
  %v1596 = vadd.f32 %v1576, %v526
  %v1597 = vadd.f32 %v1579, %v533
  %v1598 = vadd.f32 %v1582, %v540
  %1615 = vset.pattern.permute.xlu0 0
  %1616 = vperm.xlu0 %1615, %v1583
  %v1617 = vpop.permute.xlu0 %1616
  %1618 = vset.pattern.permute.xlu0 0
  %1619 = vperm.xlu0 %1618, %v1584
  %v1620 = vpop.permute.xlu0 %1619
  %1621 = vset.pattern.permute.xlu0 0
  %1622 = vperm.xlu0 %1621, %v1585
  %v1623 = vpop.permute.xlu0 %1622
  %1624 = vset.pattern.permute.xlu0 0
  %1625 = vperm.xlu0 %1624, %v1586
  %v1626 = vpop.permute.xlu0 %1625
  %1627 = vset.pattern.permute.xlu0 0
  %1628 = vperm.xlu0 %1627, %v1587
  %v1629 = vpop.permute.xlu0 %1628
  %1630 = vset.pattern.permute.xlu0 0
  %1631 = vperm.xlu0 %1630, %v1588
  %v1632 = vpop.permute.xlu0 %1631
  %1633 = vset.pattern.permute.xlu0 0
  %1634 = vperm.xlu0 %1633, %v1589
  %v1635 = vpop.permute.xlu0 %1634
  %1636 = vset.pattern.permute.xlu0 0
  %1637 = vperm.xlu0 %1636, %v1590
  %v1638 = vpop.permute.xlu0 %1637
  %1639 = vset.pattern.permute.xlu0 0
  %1640 = vperm.xlu0 %1639, %v1591
  %v1641 = vpop.permute.xlu0 %1640
  %1642 = vset.pattern.permute.xlu0 0
  %1643 = vperm.xlu0 %1642, %v1592
  %v1644 = vpop.permute.xlu0 %1643
  %1645 = vset.pattern.permute.xlu0 0
  %1646 = vperm.xlu0 %1645, %v1593
  %v1647 = vpop.permute.xlu0 %1646
  %1648 = vset.pattern.permute.xlu0 0
  %1649 = vperm.xlu0 %1648, %v1594
  %v1650 = vpop.permute.xlu0 %1649
  %1651 = vset.pattern.permute.xlu0 0
  %1652 = vperm.xlu0 %1651, %v1595
  %v1653 = vpop.permute.xlu0 %1652
  %1654 = vset.pattern.permute.xlu0 0
  %1655 = vperm.xlu0 %1654, %v1596
  %v1656 = vpop.permute.xlu0 %1655
  %1657 = vset.pattern.permute.xlu0 0
  %1658 = vperm.xlu0 %1657, %v1597
  %v1659 = vpop.permute.xlu0 %1658
  %1660 = vset.pattern.permute.xlu0 0
  %1661 = vperm.xlu0 %1660, %v1598
  %v1662 = vpop.permute.xlu0 %1661
  %v1663 = vperm.slane %v1617, %v638
  %v1664 = vperm.slane %v1620, %v638
  %v1665 = vperm.slane %v1623, %v638
  %v1666 = vperm.slane %v1626, %v638
  %v1667 = vperm.slane %v1629, %v638
  %v1668 = vperm.slane %v1632, %v638
  %v1669 = vperm.slane %v1635, %v638
  %v1670 = vperm.slane %v1638, %v638
  %v1671 = vperm.slane %v1641, %v638
  %v1672 = vperm.slane %v1644, %v638
  %v1673 = vperm.slane %v1647, %v638
  %v1674 = vperm.slane %v1650, %v638
  %v1675 = vperm.slane %v1653, %v638
  %v1676 = vperm.slane %v1656, %v638
  %v1677 = vperm.slane %v1659, %v638
  %v1678 = vperm.slane %v1662, %v638
  %v1679 = vsel %vm655, %v1664, %v1663
  %v1680 = vsel %vm657, %v1665, %v1679
  %v1681 = vsel %vm659, %v1666, %v1680
  %v1682 = vsel %vm661, %v1667, %v1681
  %v1683 = vsel %vm663, %v1668, %v1682
  %v1684 = vsel %vm665, %v1669, %v1683
  %v1685 = vsel %vm667, %v1670, %v1684
  %v1686 = vsel %vm655, %v1672, %v1671
  %v1687 = vsel %vm657, %v1673, %v1686
  %v1688 = vsel %vm659, %v1674, %v1687
  %v1689 = vsel %vm661, %v1675, %v1688
  %v1690 = vsel %vm663, %v1676, %v1689
  %v1691 = vsel %vm665, %v1677, %v1690
  %v1692 = vsel %vm667, %v1678, %v1691
  %v1695 = vsel %vm49, %v1685, -inf
  %1696 = vmax.xlane.f32.xlu0 %v1695
  %v1697 = vpop.xlane.xlu0 %1696
  %v1698 = vsel %vm49, %v1692, -inf
  %1699 = vmax.xlane.f32.xlu0 %v1698
  %v1700 = vpop.xlane.xlu0 %1699
  %v1703 = vperm.slane %v1697, 0
  %v1704 = vperm.slane %v1697, 1
  %v1705 = vperm.slane %v1697, 2
  %v1706 = vperm.slane %v1697, 3
  %v1707 = vperm.slane %v1697, 4
  %v1708 = vperm.slane %v1697, 5
  %v1709 = vperm.slane %v1697, 6
  %v1710 = vperm.slane %v1697, 7
  %v1711 = vperm.slane %v1700, 0
  %v1712 = vperm.slane %v1700, 1
  %v1713 = vperm.slane %v1700, 2
  %v1714 = vperm.slane %v1700, 3
  %v1715 = vperm.slane %v1700, 4
  %v1716 = vperm.slane %v1700, 5
  %v1717 = vperm.slane %v1700, 6
  %v1718 = vperm.slane %v1700, 7
  %v1735 = vsub.f32 %v1583, %v1703
  %v1736 = vsub.f32 %v1584, %v1704
  %v1737 = vsub.f32 %v1585, %v1705
  %v1738 = vsub.f32 %v1586, %v1706
  %v1739 = vsub.f32 %v1587, %v1707
  %v1740 = vsub.f32 %v1588, %v1708
  %v1741 = vsub.f32 %v1589, %v1709
  %v1742 = vsub.f32 %v1590, %v1710
  %v1743 = vsub.f32 %v1591, %v1711
  %v1744 = vsub.f32 %v1592, %v1712
  %v1745 = vsub.f32 %v1593, %v1713
  %v1746 = vsub.f32 %v1594, %v1714
  %v1747 = vsub.f32 %v1595, %v1715
  %v1748 = vsub.f32 %v1596, %v1716
  %v1749 = vsub.f32 %v1597, %v1717
  %v1750 = vsub.f32 %v1598, %v1718
  %v1751 = vmul.f32 %v1735, 0.6666667
  %v1752 = vmul.f32 %v1736, 0.6666667
  %v1753 = vmul.f32 %v1737, 0.6666667
  %v1754 = vmul.f32 %v1738, 0.6666667
  %v1755 = vmul.f32 %v1739, 0.6666667
  %v1756 = vmul.f32 %v1740, 0.6666667
  %v1757 = vmul.f32 %v1741, 0.6666667
  %v1758 = vmul.f32 %v1742, 0.6666667
  %v1759 = vmul.f32 %v1743, 0.6666667
  %v1760 = vmul.f32 %v1744, 0.6666667
  %v1761 = vmul.f32 %v1745, 0.6666667
  %v1762 = vmul.f32 %v1746, 0.6666667
  %v1763 = vmul.f32 %v1747, 0.6666667
  %v1764 = vmul.f32 %v1748, 0.6666667
  %v1765 = vmul.f32 %v1749, 0.6666667
  %v1766 = vmul.f32 %v1750, 0.6666667
  %v1767 = vmul.f32 %v1751, 1.442695
  %v1768 = vpow.pop %v1767
  %v1769 = vmul.f32 %v1752, 1.442695
  %v1770 = vpow.pop %v1769
  %v1771 = vmul.f32 %v1753, 1.442695
  %v1772 = vpow.pop %v1771
  %v1773 = vmul.f32 %v1754, 1.442695
  %v1774 = vpow.pop %v1773
  %v1775 = vmul.f32 %v1755, 1.442695
  %v1776 = vpow.pop %v1775
  %v1777 = vmul.f32 %v1756, 1.442695
  %v1778 = vpow.pop %v1777
  %v1779 = vmul.f32 %v1757, 1.442695
  %v1780 = vpow.pop %v1779
  %v1781 = vmul.f32 %v1758, 1.442695
  %v1782 = vpow.pop %v1781
  %v1783 = vmul.f32 %v1759, 1.442695
  %v1784 = vpow.pop %v1783
  %v1785 = vmul.f32 %v1760, 1.442695
  %v1786 = vpow.pop %v1785
  %v1787 = vmul.f32 %v1761, 1.442695
  %v1788 = vpow.pop %v1787
  %v1789 = vmul.f32 %v1762, 1.442695
  %v1790 = vpow.pop %v1789
  %v1791 = vmul.f32 %v1763, 1.442695
  %v1792 = vpow.pop %v1791
  %v1793 = vmul.f32 %v1764, 1.442695
  %v1794 = vpow.pop %v1793
  %v1795 = vmul.f32 %v1765, 1.442695
  %v1796 = vpow.pop %v1795
  %v1797 = vmul.f32 %v1766, 1.442695
  %v1798 = vpow.pop %v1797
  %1815 = vset.pattern.permute.xlu0 0
  %1816 = vperm.xlu0 %1815, %v1768
  %v1817 = vpop.permute.xlu0 %1816
  %1818 = vset.pattern.permute.xlu0 0
  %1819 = vperm.xlu0 %1818, %v1770
  %v1820 = vpop.permute.xlu0 %1819
  %1821 = vset.pattern.permute.xlu0 0
  %1822 = vperm.xlu0 %1821, %v1772
  %v1823 = vpop.permute.xlu0 %1822
  %1824 = vset.pattern.permute.xlu0 0
  %1825 = vperm.xlu0 %1824, %v1774
  %v1826 = vpop.permute.xlu0 %1825
  %1827 = vset.pattern.permute.xlu0 0
  %1828 = vperm.xlu0 %1827, %v1776
  %v1829 = vpop.permute.xlu0 %1828
  %1830 = vset.pattern.permute.xlu0 0
  %1831 = vperm.xlu0 %1830, %v1778
  %v1832 = vpop.permute.xlu0 %1831
  %1833 = vset.pattern.permute.xlu0 0
  %1834 = vperm.xlu0 %1833, %v1780
  %v1835 = vpop.permute.xlu0 %1834
  %1836 = vset.pattern.permute.xlu0 0
  %1837 = vperm.xlu0 %1836, %v1782
  %v1838 = vpop.permute.xlu0 %1837
  %1839 = vset.pattern.permute.xlu0 0
  %1840 = vperm.xlu0 %1839, %v1784
  %v1841 = vpop.permute.xlu0 %1840
  %1842 = vset.pattern.permute.xlu0 0
  %1843 = vperm.xlu0 %1842, %v1786
  %v1844 = vpop.permute.xlu0 %1843
  %1845 = vset.pattern.permute.xlu0 0
  %1846 = vperm.xlu0 %1845, %v1788
  %v1847 = vpop.permute.xlu0 %1846
  %1848 = vset.pattern.permute.xlu0 0
  %1849 = vperm.xlu0 %1848, %v1790
  %v1850 = vpop.permute.xlu0 %1849
  %1851 = vset.pattern.permute.xlu0 0
  %1852 = vperm.xlu0 %1851, %v1792
  %v1853 = vpop.permute.xlu0 %1852
  %1854 = vset.pattern.permute.xlu0 0
  %1855 = vperm.xlu0 %1854, %v1794
  %v1856 = vpop.permute.xlu0 %1855
  %1857 = vset.pattern.permute.xlu0 0
  %1858 = vperm.xlu0 %1857, %v1796
  %v1859 = vpop.permute.xlu0 %1858
  %1860 = vset.pattern.permute.xlu0 0
  %1861 = vperm.xlu0 %1860, %v1798
  %v1862 = vpop.permute.xlu0 %1861
  %v1863 = vperm.slane %v1817, %v638
  %v1864 = vperm.slane %v1820, %v638
  %v1865 = vperm.slane %v1823, %v638
  %v1866 = vperm.slane %v1826, %v638
  %v1867 = vperm.slane %v1829, %v638
  %v1868 = vperm.slane %v1832, %v638
  %v1869 = vperm.slane %v1835, %v638
  %v1870 = vperm.slane %v1838, %v638
  %v1871 = vperm.slane %v1841, %v638
  %v1872 = vperm.slane %v1844, %v638
  %v1873 = vperm.slane %v1847, %v638
  %v1874 = vperm.slane %v1850, %v638
  %v1875 = vperm.slane %v1853, %v638
  %v1876 = vperm.slane %v1856, %v638
  %v1877 = vperm.slane %v1859, %v638
  %v1878 = vperm.slane %v1862, %v638
  %v1879 = vsel %vm655, %v1864, %v1863
  %v1880 = vsel %vm657, %v1865, %v1879
  %v1881 = vsel %vm659, %v1866, %v1880
  %v1882 = vsel %vm661, %v1867, %v1881
  %v1883 = vsel %vm663, %v1868, %v1882
  %v1884 = vsel %vm665, %v1869, %v1883
  %v1885 = vsel %vm667, %v1870, %v1884
  %v1886 = vsel %vm655, %v1872, %v1871
  %v1887 = vsel %vm657, %v1873, %v1886
  %v1888 = vsel %vm659, %v1874, %v1887
  %v1889 = vsel %vm661, %v1875, %v1888
  %v1890 = vsel %vm663, %v1876, %v1889
  %v1891 = vsel %vm665, %v1877, %v1890
  %v1892 = vsel %vm667, %v1878, %v1891
  %v1895 = vsel %vm49, %v1885, 0.0
  %1896 = vadd.xlane.f32.xlu0 %v1895
  %v1897 = vpop.xlane.xlu0 %1896
  %v1898 = vsel %vm49, %v1892, 0.0
  %1899 = vadd.xlane.f32.xlu0 %v1898
  %v1900 = vpop.xlane.xlu0 %1899
  %v1901 = vrcp.pop %v1897
  %v1902 = vrcp.pop %v1900
  %v1905 = vperm.slane %v1901, 0
  %v1906 = vperm.slane %v1901, 1
  %v1907 = vperm.slane %v1901, 2
  %v1908 = vperm.slane %v1901, 3
  %v1909 = vperm.slane %v1901, 4
  %v1910 = vperm.slane %v1901, 5
  %v1911 = vperm.slane %v1901, 6
  %v1912 = vperm.slane %v1901, 7
  %v1913 = vperm.slane %v1902, 0
  %v1914 = vperm.slane %v1902, 1
  %v1915 = vperm.slane %v1902, 2
  %v1916 = vperm.slane %v1902, 3
  %v1917 = vperm.slane %v1902, 4
  %v1918 = vperm.slane %v1902, 5
  %v1919 = vperm.slane %v1902, 6
  %v1920 = vperm.slane %v1902, 7
  %v1937 = vmul.f32 %v1768, %v1905
  %v1938 = vmul.f32 %v1770, %v1906
  %v1939 = vmul.f32 %v1772, %v1907
  %v1940 = vmul.f32 %v1774, %v1908
  %v1941 = vmul.f32 %v1776, %v1909
  %v1942 = vmul.f32 %v1778, %v1910
  %v1943 = vmul.f32 %v1780, %v1911
  %v1944 = vmul.f32 %v1782, %v1912
  %v1945 = vmul.f32 %v1784, %v1913
  %v1946 = vmul.f32 %v1786, %v1914
  %v1947 = vmul.f32 %v1788, %v1915
  %v1948 = vmul.f32 %v1790, %v1916
  %v1949 = vmul.f32 %v1792, %v1917
  %v1950 = vmul.f32 %v1794, %v1918
  %v1951 = vmul.f32 %v1796, %v1919
  %v1952 = vmul.f32 %v1798, %v1920
  %1954 = vset.pattern.permute.xlu0 0
  %1955 = vperm.xlu0 %1954, %v1937
  %v1956 = vpop.permute.xlu0 %1955
  %v1957 = vperm.slane %v1956, %v638
  %v1958 = vsel %vm49, %v1957, 0
  %1960 = vmatpush.msra.mxu0 0.0
  %1961 = vmatpush.msra.mxu0 0.0
  %1962 = vmatpush.msra.mxu0 0.0
  %1963 = vmatpush.msra.mxu0 0.0
  %1964 = vmatpush.msra.mxu0 0.0
  %1965 = vmatpush.msra.mxu0 0.0
  %1966 = vmatpush.msra.mxu0 0.0
  %1967 = vmatpush.msra.mxu0 0.0
  %1968 = vmatpush.msra.mxu0 0.0
  %1969 = vmatpush.msra.mxu0 0.0
  %1970 = vmatpush.msra.mxu0 0.0
  %1971 = vmatpush.msra.mxu0 0.0
  %1972 = vmatpush.msra.mxu0 0.0
  %1973 = vmatpush.msra.mxu0 0.0
  %1974 = vmatpush.msra.mxu0 0.0
  %1975 = vmatpush.msra.mxu0 %v172
  %1976 = vmatmul.f32.gmra.mxu0 %v1958
  %v1977 = vpop.f32.mrf.mxu0
  %v1978 = vadd.f32 0.0, %v1977
  %1979 = vdwg.mxu0
  %1981 = vset.pattern.permute.xlu0 0
  %1982 = vperm.xlu0 %1981, %v1938
  %v1983 = vpop.permute.xlu0 %1982
  %v1984 = vperm.slane %v1983, %v638
  %v1985 = vsel %vm49, %v1984, 0
  %1987 = vmatpush.msra.mxu0 0.0
  %1988 = vmatpush.msra.mxu0 0.0
  %1989 = vmatpush.msra.mxu0 0.0
  %1990 = vmatpush.msra.mxu0 0.0
  %1991 = vmatpush.msra.mxu0 0.0
  %1992 = vmatpush.msra.mxu0 0.0
  %1993 = vmatpush.msra.mxu0 0.0
  %1994 = vmatpush.msra.mxu0 0.0
  %1995 = vmatpush.msra.mxu0 0.0
  %1996 = vmatpush.msra.mxu0 0.0
  %1997 = vmatpush.msra.mxu0 0.0
  %1998 = vmatpush.msra.mxu0 0.0
  %1999 = vmatpush.msra.mxu0 0.0
  %2000 = vmatpush.msra.mxu0 0.0
  %2001 = vmatpush.msra.mxu0 0.0
  %2002 = vmatpush.msra.mxu0 %v173
  %2003 = vmatmul.f32.gmra.mxu0 %v1985
  %v2004 = vpop.f32.mrf.mxu0
  %v2005 = vadd.f32 0.0, %v2004
  %2006 = vdwg.mxu0
  %2008 = vset.pattern.permute.xlu0 0
  %2009 = vperm.xlu0 %2008, %v1939
  %v2010 = vpop.permute.xlu0 %2009
  %v2011 = vperm.slane %v2010, %v638
  %v2012 = vsel %vm49, %v2011, 0
  %2014 = vmatpush.msra.mxu0 0.0
  %2015 = vmatpush.msra.mxu0 0.0
  %2016 = vmatpush.msra.mxu0 0.0
  %2017 = vmatpush.msra.mxu0 0.0
  %2018 = vmatpush.msra.mxu0 0.0
  %2019 = vmatpush.msra.mxu0 0.0
  %2020 = vmatpush.msra.mxu0 0.0
  %2021 = vmatpush.msra.mxu0 0.0
  %2022 = vmatpush.msra.mxu0 0.0
  %2023 = vmatpush.msra.mxu0 0.0
  %2024 = vmatpush.msra.mxu0 0.0
  %2025 = vmatpush.msra.mxu0 0.0
  %2026 = vmatpush.msra.mxu0 0.0
  %2027 = vmatpush.msra.mxu0 0.0
  %2028 = vmatpush.msra.mxu0 0.0
  %2029 = vmatpush.msra.mxu0 %v174
  %2030 = vmatmul.f32.gmra.mxu0 %v2012
  %v2031 = vpop.f32.mrf.mxu0
  %v2032 = vadd.f32 0.0, %v2031
  %2033 = vdwg.mxu0
  %2035 = vset.pattern.permute.xlu0 0
  %2036 = vperm.xlu0 %2035, %v1940
  %v2037 = vpop.permute.xlu0 %2036
  %v2038 = vperm.slane %v2037, %v638
  %v2039 = vsel %vm49, %v2038, 0
  %2041 = vmatpush.msra.mxu0 0.0
  %2042 = vmatpush.msra.mxu0 0.0
  %2043 = vmatpush.msra.mxu0 0.0
  %2044 = vmatpush.msra.mxu0 0.0
  %2045 = vmatpush.msra.mxu0 0.0
  %2046 = vmatpush.msra.mxu0 0.0
  %2047 = vmatpush.msra.mxu0 0.0
  %2048 = vmatpush.msra.mxu0 0.0
  %2049 = vmatpush.msra.mxu0 0.0
  %2050 = vmatpush.msra.mxu0 0.0
  %2051 = vmatpush.msra.mxu0 0.0
  %2052 = vmatpush.msra.mxu0 0.0
  %2053 = vmatpush.msra.mxu0 0.0
  %2054 = vmatpush.msra.mxu0 0.0
  %2055 = vmatpush.msra.mxu0 0.0
  %2056 = vmatpush.msra.mxu0 %v175
  %2057 = vmatmul.f32.gmra.mxu0 %v2039
  %v2058 = vpop.f32.mrf.mxu0
  %v2059 = vadd.f32 0.0, %v2058
  %2060 = vdwg.mxu0
  %2062 = vset.pattern.permute.xlu0 0
  %2063 = vperm.xlu0 %2062, %v1941
  %v2064 = vpop.permute.xlu0 %2063
  %v2065 = vperm.slane %v2064, %v638
  %v2066 = vsel %vm49, %v2065, 0
  %2068 = vmatpush.msra.mxu0 0.0
  %2069 = vmatpush.msra.mxu0 0.0
  %2070 = vmatpush.msra.mxu0 0.0
  %2071 = vmatpush.msra.mxu0 0.0
  %2072 = vmatpush.msra.mxu0 0.0
  %2073 = vmatpush.msra.mxu0 0.0
  %2074 = vmatpush.msra.mxu0 0.0
  %2075 = vmatpush.msra.mxu0 0.0
  %2076 = vmatpush.msra.mxu0 0.0
  %2077 = vmatpush.msra.mxu0 0.0
  %2078 = vmatpush.msra.mxu0 0.0
  %2079 = vmatpush.msra.mxu0 0.0
  %2080 = vmatpush.msra.mxu0 0.0
  %2081 = vmatpush.msra.mxu0 0.0
  %2082 = vmatpush.msra.mxu0 0.0
  %2083 = vmatpush.msra.mxu0 %v176
  %2084 = vmatmul.f32.gmra.mxu0 %v2066
  %v2085 = vpop.f32.mrf.mxu0
  %v2086 = vadd.f32 0.0, %v2085
  %2087 = vdwg.mxu0
  %2089 = vset.pattern.permute.xlu0 0
  %2090 = vperm.xlu0 %2089, %v1942
  %v2091 = vpop.permute.xlu0 %2090
  %v2092 = vperm.slane %v2091, %v638
  %v2093 = vsel %vm49, %v2092, 0
  %2095 = vmatpush.msra.mxu0 0.0
  %2096 = vmatpush.msra.mxu0 0.0
  %2097 = vmatpush.msra.mxu0 0.0
  %2098 = vmatpush.msra.mxu0 0.0
  %2099 = vmatpush.msra.mxu0 0.0
  %2100 = vmatpush.msra.mxu0 0.0
  %2101 = vmatpush.msra.mxu0 0.0
  %2102 = vmatpush.msra.mxu0 0.0
  %2103 = vmatpush.msra.mxu0 0.0
  %2104 = vmatpush.msra.mxu0 0.0
  %2105 = vmatpush.msra.mxu0 0.0
  %2106 = vmatpush.msra.mxu0 0.0
  %2107 = vmatpush.msra.mxu0 0.0
  %2108 = vmatpush.msra.mxu0 0.0
  %2109 = vmatpush.msra.mxu0 0.0
  %2110 = vmatpush.msra.mxu0 %v177
  %2111 = vmatmul.f32.gmra.mxu0 %v2093
  %v2112 = vpop.f32.mrf.mxu0
  %v2113 = vadd.f32 0.0, %v2112
  %2114 = vdwg.mxu0
  %2116 = vset.pattern.permute.xlu0 0
  %2117 = vperm.xlu0 %2116, %v1943
  %v2118 = vpop.permute.xlu0 %2117
  %v2119 = vperm.slane %v2118, %v638
  %v2120 = vsel %vm49, %v2119, 0
  %2122 = vmatpush.msra.mxu0 0.0
  %2123 = vmatpush.msra.mxu0 0.0
  %2124 = vmatpush.msra.mxu0 0.0
  %2125 = vmatpush.msra.mxu0 0.0
  %2126 = vmatpush.msra.mxu0 0.0
  %2127 = vmatpush.msra.mxu0 0.0
  %2128 = vmatpush.msra.mxu0 0.0
  %2129 = vmatpush.msra.mxu0 0.0
  %2130 = vmatpush.msra.mxu0 0.0
  %2131 = vmatpush.msra.mxu0 0.0
  %2132 = vmatpush.msra.mxu0 0.0
  %2133 = vmatpush.msra.mxu0 0.0
  %2134 = vmatpush.msra.mxu0 0.0
  %2135 = vmatpush.msra.mxu0 0.0
  %2136 = vmatpush.msra.mxu0 0.0
  %2137 = vmatpush.msra.mxu0 %v178
  %2138 = vmatmul.f32.gmra.mxu0 %v2120
  %v2139 = vpop.f32.mrf.mxu0
  %v2140 = vadd.f32 0.0, %v2139
  %2141 = vdwg.mxu0
  %2143 = vset.pattern.permute.xlu0 0
  %2144 = vperm.xlu0 %2143, %v1944
  %v2145 = vpop.permute.xlu0 %2144
  %v2146 = vperm.slane %v2145, %v638
  %v2147 = vsel %vm49, %v2146, 0
  %2149 = vmatpush.msra.mxu0 0.0
  %2150 = vmatpush.msra.mxu0 0.0
  %2151 = vmatpush.msra.mxu0 0.0
  %2152 = vmatpush.msra.mxu0 0.0
  %2153 = vmatpush.msra.mxu0 0.0
  %2154 = vmatpush.msra.mxu0 0.0
  %2155 = vmatpush.msra.mxu0 0.0
  %2156 = vmatpush.msra.mxu0 0.0
  %2157 = vmatpush.msra.mxu0 0.0
  %2158 = vmatpush.msra.mxu0 0.0
  %2159 = vmatpush.msra.mxu0 0.0
  %2160 = vmatpush.msra.mxu0 0.0
  %2161 = vmatpush.msra.mxu0 0.0
  %2162 = vmatpush.msra.mxu0 0.0
  %2163 = vmatpush.msra.mxu0 0.0
  %2164 = vmatpush.msra.mxu0 %v179
  %2165 = vmatmul.f32.gmra.mxu0 %v2147
  %v2166 = vpop.f32.mrf.mxu0
  %v2167 = vadd.f32 0.0, %v2166
  %2168 = vdwg.mxu0
  %2170 = vset.pattern.permute.xlu0 0
  %2171 = vperm.xlu0 %2170, %v1945
  %v2172 = vpop.permute.xlu0 %2171
  %v2173 = vperm.slane %v2172, %v638
  %v2174 = vsel %vm49, %v2173, 0
  %2176 = vmatpush.msra.mxu0 0.0
  %2177 = vmatpush.msra.mxu0 0.0
  %2178 = vmatpush.msra.mxu0 0.0
  %2179 = vmatpush.msra.mxu0 0.0
  %2180 = vmatpush.msra.mxu0 0.0
  %2181 = vmatpush.msra.mxu0 0.0
  %2182 = vmatpush.msra.mxu0 0.0
  %2183 = vmatpush.msra.mxu0 0.0
  %2184 = vmatpush.msra.mxu0 0.0
  %2185 = vmatpush.msra.mxu0 0.0
  %2186 = vmatpush.msra.mxu0 0.0
  %2187 = vmatpush.msra.mxu0 0.0
  %2188 = vmatpush.msra.mxu0 0.0
  %2189 = vmatpush.msra.mxu0 0.0
  %2190 = vmatpush.msra.mxu0 0.0
  %2191 = vmatpush.msra.mxu0 %v180
  %2192 = vmatmul.f32.gmra.mxu0 %v2174
  %v2193 = vpop.f32.mrf.mxu0
  %v2194 = vadd.f32 0.0, %v2193
  %2195 = vdwg.mxu0
  %2197 = vset.pattern.permute.xlu0 0
  %2198 = vperm.xlu0 %2197, %v1946
  %v2199 = vpop.permute.xlu0 %2198
  %v2200 = vperm.slane %v2199, %v638
  %v2201 = vsel %vm49, %v2200, 0
  %2203 = vmatpush.msra.mxu0 0.0
  %2204 = vmatpush.msra.mxu0 0.0
  %2205 = vmatpush.msra.mxu0 0.0
  %2206 = vmatpush.msra.mxu0 0.0
  %2207 = vmatpush.msra.mxu0 0.0
  %2208 = vmatpush.msra.mxu0 0.0
  %2209 = vmatpush.msra.mxu0 0.0
  %2210 = vmatpush.msra.mxu0 0.0
  %2211 = vmatpush.msra.mxu0 0.0
  %2212 = vmatpush.msra.mxu0 0.0
  %2213 = vmatpush.msra.mxu0 0.0
  %2214 = vmatpush.msra.mxu0 0.0
  %2215 = vmatpush.msra.mxu0 0.0
  %2216 = vmatpush.msra.mxu0 0.0
  %2217 = vmatpush.msra.mxu0 0.0
  %2218 = vmatpush.msra.mxu0 %v181
  %2219 = vmatmul.f32.gmra.mxu0 %v2201
  %v2220 = vpop.f32.mrf.mxu0
  %v2221 = vadd.f32 0.0, %v2220
  %2222 = vdwg.mxu0
  %2224 = vset.pattern.permute.xlu0 0
  %2225 = vperm.xlu0 %2224, %v1947
  %v2226 = vpop.permute.xlu0 %2225
  %v2227 = vperm.slane %v2226, %v638
  %v2228 = vsel %vm49, %v2227, 0
  %2230 = vmatpush.msra.mxu0 0.0
  %2231 = vmatpush.msra.mxu0 0.0
  %2232 = vmatpush.msra.mxu0 0.0
  %2233 = vmatpush.msra.mxu0 0.0
  %2234 = vmatpush.msra.mxu0 0.0
  %2235 = vmatpush.msra.mxu0 0.0
  %2236 = vmatpush.msra.mxu0 0.0
  %2237 = vmatpush.msra.mxu0 0.0
  %2238 = vmatpush.msra.mxu0 0.0
  %2239 = vmatpush.msra.mxu0 0.0
  %2240 = vmatpush.msra.mxu0 0.0
  %2241 = vmatpush.msra.mxu0 0.0
  %2242 = vmatpush.msra.mxu0 0.0
  %2243 = vmatpush.msra.mxu0 0.0
  %2244 = vmatpush.msra.mxu0 0.0
  %2245 = vmatpush.msra.mxu0 %v182
  %2246 = vmatmul.f32.gmra.mxu0 %v2228
  %v2247 = vpop.f32.mrf.mxu0
  %v2248 = vadd.f32 0.0, %v2247
  %2249 = vdwg.mxu0
  %2251 = vset.pattern.permute.xlu0 0
  %2252 = vperm.xlu0 %2251, %v1948
  %v2253 = vpop.permute.xlu0 %2252
  %v2254 = vperm.slane %v2253, %v638
  %v2255 = vsel %vm49, %v2254, 0
  %2257 = vmatpush.msra.mxu0 0.0
  %2258 = vmatpush.msra.mxu0 0.0
  %2259 = vmatpush.msra.mxu0 0.0
  %2260 = vmatpush.msra.mxu0 0.0
  %2261 = vmatpush.msra.mxu0 0.0
  %2262 = vmatpush.msra.mxu0 0.0
  %2263 = vmatpush.msra.mxu0 0.0
  %2264 = vmatpush.msra.mxu0 0.0
  %2265 = vmatpush.msra.mxu0 0.0
  %2266 = vmatpush.msra.mxu0 0.0
  %2267 = vmatpush.msra.mxu0 0.0
  %2268 = vmatpush.msra.mxu0 0.0
  %2269 = vmatpush.msra.mxu0 0.0
  %2270 = vmatpush.msra.mxu0 0.0
  %2271 = vmatpush.msra.mxu0 0.0
  %2272 = vmatpush.msra.mxu0 %v183
  %2273 = vmatmul.f32.gmra.mxu0 %v2255
  %v2274 = vpop.f32.mrf.mxu0
  %v2275 = vadd.f32 0.0, %v2274
  %2276 = vdwg.mxu0
  %2278 = vset.pattern.permute.xlu0 0
  %2279 = vperm.xlu0 %2278, %v1949
  %v2280 = vpop.permute.xlu0 %2279
  %v2281 = vperm.slane %v2280, %v638
  %v2282 = vsel %vm49, %v2281, 0
  %2284 = vmatpush.msra.mxu0 0.0
  %2285 = vmatpush.msra.mxu0 0.0
  %2286 = vmatpush.msra.mxu0 0.0
  %2287 = vmatpush.msra.mxu0 0.0
  %2288 = vmatpush.msra.mxu0 0.0
  %2289 = vmatpush.msra.mxu0 0.0
  %2290 = vmatpush.msra.mxu0 0.0
  %2291 = vmatpush.msra.mxu0 0.0
  %2292 = vmatpush.msra.mxu0 0.0
  %2293 = vmatpush.msra.mxu0 0.0
  %2294 = vmatpush.msra.mxu0 0.0
  %2295 = vmatpush.msra.mxu0 0.0
  %2296 = vmatpush.msra.mxu0 0.0
  %2297 = vmatpush.msra.mxu0 0.0
  %2298 = vmatpush.msra.mxu0 0.0
  %2299 = vmatpush.msra.mxu0 %v184
  %2300 = vmatmul.f32.gmra.mxu0 %v2282
  %v2301 = vpop.f32.mrf.mxu0
  %v2302 = vadd.f32 0.0, %v2301
  %2303 = vdwg.mxu0
  %2305 = vset.pattern.permute.xlu0 0
  %2306 = vperm.xlu0 %2305, %v1950
  %v2307 = vpop.permute.xlu0 %2306
  %v2308 = vperm.slane %v2307, %v638
  %v2309 = vsel %vm49, %v2308, 0
  %2311 = vmatpush.msra.mxu0 0.0
  %2312 = vmatpush.msra.mxu0 0.0
  %2313 = vmatpush.msra.mxu0 0.0
  %2314 = vmatpush.msra.mxu0 0.0
  %2315 = vmatpush.msra.mxu0 0.0
  %2316 = vmatpush.msra.mxu0 0.0
  %2317 = vmatpush.msra.mxu0 0.0
  %2318 = vmatpush.msra.mxu0 0.0
  %2319 = vmatpush.msra.mxu0 0.0
  %2320 = vmatpush.msra.mxu0 0.0
  %2321 = vmatpush.msra.mxu0 0.0
  %2322 = vmatpush.msra.mxu0 0.0
  %2323 = vmatpush.msra.mxu0 0.0
  %2324 = vmatpush.msra.mxu0 0.0
  %2325 = vmatpush.msra.mxu0 0.0
  %2326 = vmatpush.msra.mxu0 %v185
  %2327 = vmatmul.f32.gmra.mxu0 %v2309
  %v2328 = vpop.f32.mrf.mxu0
  %v2329 = vadd.f32 0.0, %v2328
  %2330 = vdwg.mxu0
  %2332 = vset.pattern.permute.xlu0 0
  %2333 = vperm.xlu0 %2332, %v1951
  %v2334 = vpop.permute.xlu0 %2333
  %v2335 = vperm.slane %v2334, %v638
  %v2336 = vsel %vm49, %v2335, 0
  %2338 = vmatpush.msra.mxu0 0.0
  %2339 = vmatpush.msra.mxu0 0.0
  %2340 = vmatpush.msra.mxu0 0.0
  %2341 = vmatpush.msra.mxu0 0.0
  %2342 = vmatpush.msra.mxu0 0.0
  %2343 = vmatpush.msra.mxu0 0.0
  %2344 = vmatpush.msra.mxu0 0.0
  %2345 = vmatpush.msra.mxu0 0.0
  %2346 = vmatpush.msra.mxu0 0.0
  %2347 = vmatpush.msra.mxu0 0.0
  %2348 = vmatpush.msra.mxu0 0.0
  %2349 = vmatpush.msra.mxu0 0.0
  %2350 = vmatpush.msra.mxu0 0.0
  %2351 = vmatpush.msra.mxu0 0.0
  %2352 = vmatpush.msra.mxu0 0.0
  %2353 = vmatpush.msra.mxu0 %v186
  %2354 = vmatmul.f32.gmra.mxu0 %v2336
  %v2355 = vpop.f32.mrf.mxu0
  %v2356 = vadd.f32 0.0, %v2355
  %2357 = vdwg.mxu0
  %2359 = vset.pattern.permute.xlu0 0
  %2360 = vperm.xlu0 %2359, %v1952
  %v2361 = vpop.permute.xlu0 %2360
  %v2362 = vperm.slane %v2361, %v638
  %v2363 = vsel %vm49, %v2362, 0
  %2365 = vmatpush.msra.mxu0 0.0
  %2366 = vmatpush.msra.mxu0 0.0
  %2367 = vmatpush.msra.mxu0 0.0
  %2368 = vmatpush.msra.mxu0 0.0
  %2369 = vmatpush.msra.mxu0 0.0
  %2370 = vmatpush.msra.mxu0 0.0
  %2371 = vmatpush.msra.mxu0 0.0
  %2372 = vmatpush.msra.mxu0 0.0
  %2373 = vmatpush.msra.mxu0 0.0
  %2374 = vmatpush.msra.mxu0 0.0
  %2375 = vmatpush.msra.mxu0 0.0
  %2376 = vmatpush.msra.mxu0 0.0
  %2377 = vmatpush.msra.mxu0 0.0
  %2378 = vmatpush.msra.mxu0 0.0
  %2379 = vmatpush.msra.mxu0 0.0
  %2380 = vmatpush.msra.mxu0 %v187
  %2381 = vmatmul.f32.gmra.mxu0 %v2363
  %v2382 = vpop.f32.mrf.mxu0
  %v2383 = vadd.f32 0.0, %v2382
  %2384 = vdwg.mxu0
  %v2385 = vld [vmem:[%s8] sm:$0xff]
  %v2386 = vld [vmem:[%s8 + $0x8] sm:$0xff]
  %v2387 = vld [vmem:[%s8 + $0x10] sm:$0xff]
  %v2388 = vld [vmem:[%s8 + $0x18] sm:$0xff]
  %v2389 = vld [vmem:[%s9] sm:$0x1]
  %v2391 = vperm.slane %v2389, 0
  %v2409 = vrot.slane %v2005, 7
  %v2410 = vsel %vm655, %v2409, %v1978
  %v2411 = vrot.slane %v2032, 6
  %v2412 = vsel %vm657, %v2411, %v2410
  %v2413 = vrot.slane %v2059, 5
  %v2414 = vsel %vm659, %v2413, %v2412
  %v2415 = vrot.slane %v2086, 4
  %v2416 = vsel %vm661, %v2415, %v2414
  %v2417 = vrot.slane %v2113, 3
  %v2418 = vsel %vm663, %v2417, %v2416
  %v2419 = vrot.slane %v2140, 2
  %v2420 = vsel %vm665, %v2419, %v2418
  %v2421 = vrot.slane %v2167, 1
  %v2422 = vsel %vm667, %v2421, %v2420
  %v2423 = vrot.slane %v2221, 7
  %v2424 = vsel %vm655, %v2423, %v2194
  %v2425 = vrot.slane %v2248, 6
  %v2426 = vsel %vm657, %v2425, %v2424
  %v2427 = vrot.slane %v2275, 5
  %v2428 = vsel %vm659, %v2427, %v2426
  %v2429 = vrot.slane %v2302, 4
  %v2430 = vsel %vm661, %v2429, %v2428
  %v2431 = vrot.slane %v2329, 3
  %v2432 = vsel %vm663, %v2431, %v2430
  %v2433 = vrot.slane %v2356, 2
  %v2434 = vsel %vm665, %v2433, %v2432
  %v2435 = vrot.slane %v2383, 1
  %v2436 = vsel %vm667, %v2435, %v2434
  %v2437 = vsel %vm254, %v2422, 0
  %v2439 = vsel %vm254, %v2436, 0
  %2441 = vmatpush.msra.mxu0 0.0
  %2442 = vmatpush.msra.mxu0 0.0
  %2443 = vmatpush.msra.mxu0 0.0
  %2444 = vmatpush.msra.mxu0 0.0
  %2445 = vmatpush.msra.mxu0 0.0
  %2446 = vmatpush.msra.mxu0 0.0
  %2447 = vmatpush.msra.mxu0 0.0
  %2448 = vmatpush.msra.mxu0 0.0
  %2449 = vmatpush.msra.mxu0 0.0
  %2450 = vmatpush.msra.mxu0 0.0
  %2451 = vmatpush.msra.mxu0 0.0
  %2452 = vmatpush.msra.mxu0 0.0
  %2453 = vmatpush.msra.mxu0 %v2388
  %2454 = vmatpush.msra.mxu0 %v2387
  %2455 = vmatpush.msra.mxu0 %v2386
  %2456 = vmatpush.msra.mxu0 %v2385
  %2457 = vmatmul.f32.gmra.mxu0 %v2437
  %v2458 = vpop.f32.mrf.mxu0
  %v2459 = vadd.f32 %v2391, %v2458
  %2460 = vmatmul.f32.gmra.mxu0 %v2439
  %v2461 = vpop.f32.mrf.mxu0
  %v2462 = vadd.f32 %v2391, %v2461
  %2463 = vdwg.mxu0
  %v2466 = vrot.slane %v2459, 1
  %v2467 = vrot.slane %v2459, 2
  %v2468 = vrot.slane %v2459, 3
  %v2469 = vrot.slane %v2459, 4
  %v2470 = vrot.slane %v2459, 5
  %v2471 = vrot.slane %v2459, 6
  %v2472 = vrot.slane %v2459, 7
  %v2473 = vrot.slane %v2462, 1
  %v2474 = vrot.slane %v2462, 2
  %v2475 = vrot.slane %v2462, 3
  %v2476 = vrot.slane %v2462, 4
  %v2477 = vrot.slane %v2462, 5
  %v2478 = vrot.slane %v2462, 6
  %v2479 = vrot.slane %v2462, 7
  %v2480 = vperm.slane %v2459, 0
  %v2481 = vperm.slane %v2466, 0
  %v2482 = vperm.slane %v2467, 0
  %v2483 = vperm.slane %v2468, 0
  %v2484 = vperm.slane %v2469, 0
  %v2485 = vperm.slane %v2470, 0
  %v2486 = vperm.slane %v2471, 0
  %v2487 = vperm.slane %v2472, 0
  %v2488 = vperm.slane %v2462, 0
  %v2489 = vperm.slane %v2473, 0
  %v2490 = vperm.slane %v2474, 0
  %v2491 = vperm.slane %v2475, 0
  %v2492 = vperm.slane %v2476, 0
  %v2493 = vperm.slane %v2477, 0
  %v2494 = vperm.slane %v2478, 0
  %v2495 = vperm.slane %v2479, 0
  %v2512 = vadd.f32 %v2480, %v224
  %v2513 = vadd.f32 %v2481, %v225
  %v2514 = vadd.f32 %v2482, %v226
  %v2515 = vadd.f32 %v2483, %v227
  %v2516 = vadd.f32 %v2484, %v228
  %v2517 = vadd.f32 %v2485, %v229
  %v2518 = vadd.f32 %v2486, %v230
  %v2519 = vadd.f32 %v2487, %v231
  %v2520 = vadd.f32 %v2488, %v232
  %v2521 = vadd.f32 %v2489, %v233
  %v2522 = vadd.f32 %v2490, %v234
  %v2523 = vadd.f32 %v2491, %v235
  %v2524 = vadd.f32 %v2492, %v236
  %v2525 = vadd.f32 %v2493, %v237
  %v2526 = vadd.f32 %v2494, %v238
  %v2527 = vadd.f32 %v2495, %v239
  %v2528 = vtanh.pop %v2512
  %v2529 = vtanh.pop %v2513
  %v2530 = vtanh.pop %v2514
  %v2531 = vtanh.pop %v2515
  %v2532 = vtanh.pop %v2516
  %v2533 = vtanh.pop %v2517
  %v2534 = vtanh.pop %v2518
  %v2535 = vtanh.pop %v2519
  %v2536 = vtanh.pop %v2520
  %v2537 = vtanh.pop %v2521
  %v2538 = vtanh.pop %v2522
  %v2539 = vtanh.pop %v2523
  %v2540 = vtanh.pop %v2524
  %v2541 = vtanh.pop %v2525
  %v2542 = vtanh.pop %v2526
  %v2543 = vtanh.pop %v2527
  %v2544 = vld [vmem:[%s11] sm:$0x1]
  %v2546 = vperm.slane %v2544, 0
  %v2548 = vmul.f32 %v2546, %v2528
  %v2549 = vmul.f32 %v2546, %v2529
  %v2550 = vmul.f32 %v2546, %v2530
  %v2551 = vmul.f32 %v2546, %v2531
  %v2552 = vmul.f32 %v2546, %v2532
  %v2553 = vmul.f32 %v2546, %v2533
  %v2554 = vmul.f32 %v2546, %v2534
  %v2555 = vmul.f32 %v2546, %v2535
  %v2556 = vmul.f32 %v2546, %v2536
  %v2557 = vmul.f32 %v2546, %v2537
  %v2558 = vmul.f32 %v2546, %v2538
  %v2559 = vmul.f32 %v2546, %v2539
  %v2560 = vmul.f32 %v2546, %v2540
  %v2561 = vmul.f32 %v2546, %v2541
  %v2562 = vmul.f32 %v2546, %v2542
  %v2563 = vmul.f32 %v2546, %v2543
  %v2564 = vsel %vm254, %v2548, 0.0
  %2565 = vadd.xlane.f32.xlu0 %v2564
  %v2566 = vpop.xlane.xlu0 %2565
  %v2567 = vsel %vm254, %v2549, 0.0
  %2568 = vadd.xlane.f32.xlu0 %v2567
  %v2569 = vpop.xlane.xlu0 %2568
  %v2570 = vsel %vm254, %v2550, 0.0
  %2571 = vadd.xlane.f32.xlu0 %v2570
  %v2572 = vpop.xlane.xlu0 %2571
  %v2573 = vsel %vm254, %v2551, 0.0
  %2574 = vadd.xlane.f32.xlu0 %v2573
  %v2575 = vpop.xlane.xlu0 %2574
  %v2576 = vsel %vm254, %v2552, 0.0
  %2577 = vadd.xlane.f32.xlu0 %v2576
  %v2578 = vpop.xlane.xlu0 %2577
  %v2579 = vsel %vm254, %v2553, 0.0
  %2580 = vadd.xlane.f32.xlu0 %v2579
  %v2581 = vpop.xlane.xlu0 %2580
  %v2582 = vsel %vm254, %v2554, 0.0
  %2583 = vadd.xlane.f32.xlu0 %v2582
  %v2584 = vpop.xlane.xlu0 %2583
  %v2585 = vsel %vm254, %v2555, 0.0
  %2586 = vadd.xlane.f32.xlu0 %v2585
  %v2587 = vpop.xlane.xlu0 %2586
  %v2588 = vsel %vm254, %v2556, 0.0
  %2589 = vadd.xlane.f32.xlu0 %v2588
  %v2590 = vpop.xlane.xlu0 %2589
  %v2591 = vsel %vm254, %v2557, 0.0
  %2592 = vadd.xlane.f32.xlu0 %v2591
  %v2593 = vpop.xlane.xlu0 %2592
  %v2594 = vsel %vm254, %v2558, 0.0
  %2595 = vadd.xlane.f32.xlu0 %v2594
  %v2596 = vpop.xlane.xlu0 %2595
  %v2597 = vsel %vm254, %v2559, 0.0
  %2598 = vadd.xlane.f32.xlu0 %v2597
  %v2599 = vpop.xlane.xlu0 %2598
  %v2600 = vsel %vm254, %v2560, 0.0
  %2601 = vadd.xlane.f32.xlu0 %v2600
  %v2602 = vpop.xlane.xlu0 %2601
  %v2603 = vsel %vm254, %v2561, 0.0
  %2604 = vadd.xlane.f32.xlu0 %v2603
  %v2605 = vpop.xlane.xlu0 %2604
  %v2606 = vsel %vm254, %v2562, 0.0
  %2607 = vadd.xlane.f32.xlu0 %v2606
  %v2608 = vpop.xlane.xlu0 %2607
  %v2609 = vsel %vm254, %v2563, 0.0
  %2610 = vadd.xlane.f32.xlu0 %v2609
  %v2611 = vpop.xlane.xlu0 %2610
  %v2612 = vmul.f32 %v2566, 10.0
  %v2613 = vmul.f32 %v2569, 10.0
  %v2614 = vmul.f32 %v2572, 10.0
  %v2615 = vmul.f32 %v2575, 10.0
  %v2616 = vmul.f32 %v2578, 10.0
  %v2617 = vmul.f32 %v2581, 10.0
  %v2618 = vmul.f32 %v2584, 10.0
  %v2619 = vmul.f32 %v2587, 10.0
  %v2620 = vmul.f32 %v2590, 10.0
  %v2621 = vmul.f32 %v2593, 10.0
  %v2622 = vmul.f32 %v2596, 10.0
  %v2623 = vmul.f32 %v2599, 10.0
  %v2624 = vmul.f32 %v2602, 10.0
  %v2625 = vmul.f32 %v2605, 10.0
  %v2626 = vmul.f32 %v2608, 10.0
  %v2627 = vmul.f32 %v2611, 10.0
  %v2628 = vadd.f32 %v2612, %v435
  %v2629 = vadd.f32 %v2613, %v442
  %v2630 = vadd.f32 %v2614, %v449
  %v2631 = vadd.f32 %v2615, %v456
  %v2632 = vadd.f32 %v2616, %v463
  %v2633 = vadd.f32 %v2617, %v470
  %v2634 = vadd.f32 %v2618, %v477
  %v2635 = vadd.f32 %v2619, %v484
  %v2636 = vadd.f32 %v2620, %v491
  %v2637 = vadd.f32 %v2621, %v498
  %v2638 = vadd.f32 %v2622, %v505
  %v2639 = vadd.f32 %v2623, %v512
  %v2640 = vadd.f32 %v2624, %v519
  %v2641 = vadd.f32 %v2625, %v526
  %v2642 = vadd.f32 %v2626, %v533
  %v2643 = vadd.f32 %v2627, %v540
  %2660 = vset.pattern.permute.xlu0 0
  %2661 = vperm.xlu0 %2660, %v2628
  %v2662 = vpop.permute.xlu0 %2661
  %2663 = vset.pattern.permute.xlu0 0
  %2664 = vperm.xlu0 %2663, %v2629
  %v2665 = vpop.permute.xlu0 %2664
  %2666 = vset.pattern.permute.xlu0 0
  %2667 = vperm.xlu0 %2666, %v2630
  %v2668 = vpop.permute.xlu0 %2667
  %2669 = vset.pattern.permute.xlu0 0
  %2670 = vperm.xlu0 %2669, %v2631
  %v2671 = vpop.permute.xlu0 %2670
  %2672 = vset.pattern.permute.xlu0 0
  %2673 = vperm.xlu0 %2672, %v2632
  %v2674 = vpop.permute.xlu0 %2673
  %2675 = vset.pattern.permute.xlu0 0
  %2676 = vperm.xlu0 %2675, %v2633
  %v2677 = vpop.permute.xlu0 %2676
  %2678 = vset.pattern.permute.xlu0 0
  %2679 = vperm.xlu0 %2678, %v2634
  %v2680 = vpop.permute.xlu0 %2679
  %2681 = vset.pattern.permute.xlu0 0
  %2682 = vperm.xlu0 %2681, %v2635
  %v2683 = vpop.permute.xlu0 %2682
  %2684 = vset.pattern.permute.xlu0 0
  %2685 = vperm.xlu0 %2684, %v2636
  %v2686 = vpop.permute.xlu0 %2685
  %2687 = vset.pattern.permute.xlu0 0
  %2688 = vperm.xlu0 %2687, %v2637
  %v2689 = vpop.permute.xlu0 %2688
  %2690 = vset.pattern.permute.xlu0 0
  %2691 = vperm.xlu0 %2690, %v2638
  %v2692 = vpop.permute.xlu0 %2691
  %2693 = vset.pattern.permute.xlu0 0
  %2694 = vperm.xlu0 %2693, %v2639
  %v2695 = vpop.permute.xlu0 %2694
  %2696 = vset.pattern.permute.xlu0 0
  %2697 = vperm.xlu0 %2696, %v2640
  %v2698 = vpop.permute.xlu0 %2697
  %2699 = vset.pattern.permute.xlu0 0
  %2700 = vperm.xlu0 %2699, %v2641
  %v2701 = vpop.permute.xlu0 %2700
  %2702 = vset.pattern.permute.xlu0 0
  %2703 = vperm.xlu0 %2702, %v2642
  %v2704 = vpop.permute.xlu0 %2703
  %2705 = vset.pattern.permute.xlu0 0
  %2706 = vperm.xlu0 %2705, %v2643
  %v2707 = vpop.permute.xlu0 %2706
  %v2708 = vperm.slane %v2662, %v638
  %v2709 = vperm.slane %v2665, %v638
  %v2710 = vperm.slane %v2668, %v638
  %v2711 = vperm.slane %v2671, %v638
  %v2712 = vperm.slane %v2674, %v638
  %v2713 = vperm.slane %v2677, %v638
  %v2714 = vperm.slane %v2680, %v638
  %v2715 = vperm.slane %v2683, %v638
  %v2716 = vperm.slane %v2686, %v638
  %v2717 = vperm.slane %v2689, %v638
  %v2718 = vperm.slane %v2692, %v638
  %v2719 = vperm.slane %v2695, %v638
  %v2720 = vperm.slane %v2698, %v638
  %v2721 = vperm.slane %v2701, %v638
  %v2722 = vperm.slane %v2704, %v638
  %v2723 = vperm.slane %v2707, %v638
  %v2724 = vsel %vm655, %v2709, %v2708
  %v2725 = vsel %vm657, %v2710, %v2724
  %v2726 = vsel %vm659, %v2711, %v2725
  %v2727 = vsel %vm661, %v2712, %v2726
  %v2728 = vsel %vm663, %v2713, %v2727
  %v2729 = vsel %vm665, %v2714, %v2728
  %v2730 = vsel %vm667, %v2715, %v2729
  %v2731 = vsel %vm655, %v2717, %v2716
  %v2732 = vsel %vm657, %v2718, %v2731
  %v2733 = vsel %vm659, %v2719, %v2732
  %v2734 = vsel %vm661, %v2720, %v2733
  %v2735 = vsel %vm663, %v2721, %v2734
  %v2736 = vsel %vm665, %v2722, %v2735
  %v2737 = vsel %vm667, %v2723, %v2736
  %v2740 = vsel %vm49, %v2730, -inf
  %2741 = vmax.xlane.f32.xlu0 %v2740
  %v2742 = vpop.xlane.xlu0 %2741
  %v2743 = vsel %vm49, %v2737, -inf
  %2744 = vmax.xlane.f32.xlu0 %v2743
  %v2745 = vpop.xlane.xlu0 %2744
  %v2748 = vperm.slane %v2742, 0
  %v2749 = vperm.slane %v2742, 1
  %v2750 = vperm.slane %v2742, 2
  %v2751 = vperm.slane %v2742, 3
  %v2752 = vperm.slane %v2742, 4
  %v2753 = vperm.slane %v2742, 5
  %v2754 = vperm.slane %v2742, 6
  %v2755 = vperm.slane %v2742, 7
  %v2756 = vperm.slane %v2745, 0
  %v2757 = vperm.slane %v2745, 1
  %v2758 = vperm.slane %v2745, 2
  %v2759 = vperm.slane %v2745, 3
  %v2760 = vperm.slane %v2745, 4
  %v2761 = vperm.slane %v2745, 5
  %v2762 = vperm.slane %v2745, 6
  %v2763 = vperm.slane %v2745, 7
  %v2780 = vsub.f32 %v2628, %v2748
  %v2781 = vsub.f32 %v2629, %v2749
  %v2782 = vsub.f32 %v2630, %v2750
  %v2783 = vsub.f32 %v2631, %v2751
  %v2784 = vsub.f32 %v2632, %v2752
  %v2785 = vsub.f32 %v2633, %v2753
  %v2786 = vsub.f32 %v2634, %v2754
  %v2787 = vsub.f32 %v2635, %v2755
  %v2788 = vsub.f32 %v2636, %v2756
  %v2789 = vsub.f32 %v2637, %v2757
  %v2790 = vsub.f32 %v2638, %v2758
  %v2791 = vsub.f32 %v2639, %v2759
  %v2792 = vsub.f32 %v2640, %v2760
  %v2793 = vsub.f32 %v2641, %v2761
  %v2794 = vsub.f32 %v2642, %v2762
  %v2795 = vsub.f32 %v2643, %v2763
  %v2796 = vmul.f32 %v2780, 1.442695
  %v2797 = vpow.pop %v2796
  %v2798 = vmul.f32 %v2781, 1.442695
  %v2799 = vpow.pop %v2798
  %v2800 = vmul.f32 %v2782, 1.442695
  %v2801 = vpow.pop %v2800
  %v2802 = vmul.f32 %v2783, 1.442695
  %v2803 = vpow.pop %v2802
  %v2804 = vmul.f32 %v2784, 1.442695
  %v2805 = vpow.pop %v2804
  %v2806 = vmul.f32 %v2785, 1.442695
  %v2807 = vpow.pop %v2806
  %v2808 = vmul.f32 %v2786, 1.442695
  %v2809 = vpow.pop %v2808
  %v2810 = vmul.f32 %v2787, 1.442695
  %v2811 = vpow.pop %v2810
  %v2812 = vmul.f32 %v2788, 1.442695
  %v2813 = vpow.pop %v2812
  %v2814 = vmul.f32 %v2789, 1.442695
  %v2815 = vpow.pop %v2814
  %v2816 = vmul.f32 %v2790, 1.442695
  %v2817 = vpow.pop %v2816
  %v2818 = vmul.f32 %v2791, 1.442695
  %v2819 = vpow.pop %v2818
  %v2820 = vmul.f32 %v2792, 1.442695
  %v2821 = vpow.pop %v2820
  %v2822 = vmul.f32 %v2793, 1.442695
  %v2823 = vpow.pop %v2822
  %v2824 = vmul.f32 %v2794, 1.442695
  %v2825 = vpow.pop %v2824
  %v2826 = vmul.f32 %v2795, 1.442695
  %v2827 = vpow.pop %v2826
  %2844 = vset.pattern.permute.xlu0 0
  %2845 = vperm.xlu0 %2844, %v2797
  %v2846 = vpop.permute.xlu0 %2845
  %2847 = vset.pattern.permute.xlu0 0
  %2848 = vperm.xlu0 %2847, %v2799
  %v2849 = vpop.permute.xlu0 %2848
  %2850 = vset.pattern.permute.xlu0 0
  %2851 = vperm.xlu0 %2850, %v2801
  %v2852 = vpop.permute.xlu0 %2851
  %2853 = vset.pattern.permute.xlu0 0
  %2854 = vperm.xlu0 %2853, %v2803
  %v2855 = vpop.permute.xlu0 %2854
  %2856 = vset.pattern.permute.xlu0 0
  %2857 = vperm.xlu0 %2856, %v2805
  %v2858 = vpop.permute.xlu0 %2857
  %2859 = vset.pattern.permute.xlu0 0
  %2860 = vperm.xlu0 %2859, %v2807
  %v2861 = vpop.permute.xlu0 %2860
  %2862 = vset.pattern.permute.xlu0 0
  %2863 = vperm.xlu0 %2862, %v2809
  %v2864 = vpop.permute.xlu0 %2863
  %2865 = vset.pattern.permute.xlu0 0
  %2866 = vperm.xlu0 %2865, %v2811
  %v2867 = vpop.permute.xlu0 %2866
  %2868 = vset.pattern.permute.xlu0 0
  %2869 = vperm.xlu0 %2868, %v2813
  %v2870 = vpop.permute.xlu0 %2869
  %2871 = vset.pattern.permute.xlu0 0
  %2872 = vperm.xlu0 %2871, %v2815
  %v2873 = vpop.permute.xlu0 %2872
  %2874 = vset.pattern.permute.xlu0 0
  %2875 = vperm.xlu0 %2874, %v2817
  %v2876 = vpop.permute.xlu0 %2875
  %2877 = vset.pattern.permute.xlu0 0
  %2878 = vperm.xlu0 %2877, %v2819
  %v2879 = vpop.permute.xlu0 %2878
  %2880 = vset.pattern.permute.xlu0 0
  %2881 = vperm.xlu0 %2880, %v2821
  %v2882 = vpop.permute.xlu0 %2881
  %2883 = vset.pattern.permute.xlu0 0
  %2884 = vperm.xlu0 %2883, %v2823
  %v2885 = vpop.permute.xlu0 %2884
  %2886 = vset.pattern.permute.xlu0 0
  %2887 = vperm.xlu0 %2886, %v2825
  %v2888 = vpop.permute.xlu0 %2887
  %2889 = vset.pattern.permute.xlu0 0
  %2890 = vperm.xlu0 %2889, %v2827
  %v2891 = vpop.permute.xlu0 %2890
  %v2892 = vperm.slane %v2846, %v638
  %v2893 = vperm.slane %v2849, %v638
  %v2894 = vperm.slane %v2852, %v638
  %v2895 = vperm.slane %v2855, %v638
  %v2896 = vperm.slane %v2858, %v638
  %v2897 = vperm.slane %v2861, %v638
  %v2898 = vperm.slane %v2864, %v638
  %v2899 = vperm.slane %v2867, %v638
  %v2900 = vperm.slane %v2870, %v638
  %v2901 = vperm.slane %v2873, %v638
  %v2902 = vperm.slane %v2876, %v638
  %v2903 = vperm.slane %v2879, %v638
  %v2904 = vperm.slane %v2882, %v638
  %v2905 = vperm.slane %v2885, %v638
  %v2906 = vperm.slane %v2888, %v638
  %v2907 = vperm.slane %v2891, %v638
  %v2908 = vsel %vm655, %v2893, %v2892
  %v2909 = vsel %vm657, %v2894, %v2908
  %v2910 = vsel %vm659, %v2895, %v2909
  %v2911 = vsel %vm661, %v2896, %v2910
  %v2912 = vsel %vm663, %v2897, %v2911
  %v2913 = vsel %vm665, %v2898, %v2912
  %v2914 = vsel %vm667, %v2899, %v2913
  %v2915 = vsel %vm655, %v2901, %v2900
  %v2916 = vsel %vm657, %v2902, %v2915
  %v2917 = vsel %vm659, %v2903, %v2916
  %v2918 = vsel %vm661, %v2904, %v2917
  %v2919 = vsel %vm663, %v2905, %v2918
  %v2920 = vsel %vm665, %v2906, %v2919
  %v2921 = vsel %vm667, %v2907, %v2920
  %v2924 = vsel %vm49, %v2914, 0.0
  %2925 = vadd.xlane.f32.xlu0 %v2924
  %v2926 = vpop.xlane.xlu0 %2925
  %v2927 = vsel %vm49, %v2921, 0.0
  %2928 = vadd.xlane.f32.xlu0 %v2927
  %v2929 = vpop.xlane.xlu0 %2928
  %v2932 = vperm.slane %v2926, 0
  %v2933 = vperm.slane %v2926, 1
  %v2934 = vperm.slane %v2926, 2
  %v2935 = vperm.slane %v2926, 3
  %v2936 = vperm.slane %v2926, 4
  %v2937 = vperm.slane %v2926, 5
  %v2938 = vperm.slane %v2926, 6
  %v2939 = vperm.slane %v2926, 7
  %v2940 = vperm.slane %v2929, 0
  %v2941 = vperm.slane %v2929, 1
  %v2942 = vperm.slane %v2929, 2
  %v2943 = vperm.slane %v2929, 3
  %v2944 = vperm.slane %v2929, 4
  %v2945 = vperm.slane %v2929, 5
  %v2946 = vperm.slane %v2929, 6
  %v2947 = vperm.slane %v2929, 7
  %v2964 = vrcp.pop %v2932
  %v2965 = vmul.f32 %v2932, %v2964
  %v2966 = vsub.f32 1.0, %v2965
  %v2967 = vmul.f32 %v2964, %v2966
  %v2968 = vadd.f32 %v2964, %v2967
  %vm2969 = vweird.f32 %v2932
  %vm2970 = vweird.f32 %v2964
  %vm2971 = vmor %vm2969, %vm2970
  %v2972 = vsel %vm2971, %v2964, %v2968
  %v2973 = vand.u32 2147483647, %v2932
  %vm2974 = vcmp.eq.f32.partialorder %v2973, 8.507059e+37
  %v2975 = vand.u32 %v2932, 2147483648
  %v2976 = vor.u32 1.1754944e-38, %v2975
  %v2977 = vsel %vm2974, %v2976, %v2972
  %v2978 = vmul.f32 %v2797, %v2977
  %v2979 = vrcp.pop %v2933
  %v2980 = vmul.f32 %v2933, %v2979
  %v2981 = vsub.f32 1.0, %v2980
  %v2982 = vmul.f32 %v2979, %v2981
  %v2983 = vadd.f32 %v2979, %v2982
  %vm2984 = vweird.f32 %v2933
  %vm2985 = vweird.f32 %v2979
  %vm2986 = vmor %vm2984, %vm2985
  %v2987 = vsel %vm2986, %v2979, %v2983
  %v2988 = vand.u32 2147483647, %v2933
  %vm2989 = vcmp.eq.f32.partialorder %v2988, 8.507059e+37
  %v2990 = vand.u32 %v2933, 2147483648
  %v2991 = vor.u32 1.1754944e-38, %v2990
  %v2992 = vsel %vm2989, %v2991, %v2987
  %v2993 = vmul.f32 %v2799, %v2992
  %v2994 = vrcp.pop %v2934
  %v2995 = vmul.f32 %v2934, %v2994
  %v2996 = vsub.f32 1.0, %v2995
  %v2997 = vmul.f32 %v2994, %v2996
  %v2998 = vadd.f32 %v2994, %v2997
  %vm2999 = vweird.f32 %v2934
  %vm3000 = vweird.f32 %v2994
  %vm3001 = vmor %vm2999, %vm3000
  %v3002 = vsel %vm3001, %v2994, %v2998
  %v3003 = vand.u32 2147483647, %v2934
  %vm3004 = vcmp.eq.f32.partialorder %v3003, 8.507059e+37
  %v3005 = vand.u32 %v2934, 2147483648
  %v3006 = vor.u32 1.1754944e-38, %v3005
  %v3007 = vsel %vm3004, %v3006, %v3002
  %v3008 = vmul.f32 %v2801, %v3007
  %v3009 = vrcp.pop %v2935
  %v3010 = vmul.f32 %v2935, %v3009
  %v3011 = vsub.f32 1.0, %v3010
  %v3012 = vmul.f32 %v3009, %v3011
  %v3013 = vadd.f32 %v3009, %v3012
  %vm3014 = vweird.f32 %v2935
  %vm3015 = vweird.f32 %v3009
  %vm3016 = vmor %vm3014, %vm3015
  %v3017 = vsel %vm3016, %v3009, %v3013
  %v3018 = vand.u32 2147483647, %v2935
  %vm3019 = vcmp.eq.f32.partialorder %v3018, 8.507059e+37
  %v3020 = vand.u32 %v2935, 2147483648
  %v3021 = vor.u32 1.1754944e-38, %v3020
  %v3022 = vsel %vm3019, %v3021, %v3017
  %v3023 = vmul.f32 %v2803, %v3022
  %v3024 = vrcp.pop %v2936
  %v3025 = vmul.f32 %v2936, %v3024
  %v3026 = vsub.f32 1.0, %v3025
  %v3027 = vmul.f32 %v3024, %v3026
  %v3028 = vadd.f32 %v3024, %v3027
  %vm3029 = vweird.f32 %v2936
  %vm3030 = vweird.f32 %v3024
  %vm3031 = vmor %vm3029, %vm3030
  %v3032 = vsel %vm3031, %v3024, %v3028
  %v3033 = vand.u32 2147483647, %v2936
  %vm3034 = vcmp.eq.f32.partialorder %v3033, 8.507059e+37
  %v3035 = vand.u32 %v2936, 2147483648
  %v3036 = vor.u32 1.1754944e-38, %v3035
  %v3037 = vsel %vm3034, %v3036, %v3032
  %v3038 = vmul.f32 %v2805, %v3037
  %v3039 = vrcp.pop %v2937
  %v3040 = vmul.f32 %v2937, %v3039
  %v3041 = vsub.f32 1.0, %v3040
  %v3042 = vmul.f32 %v3039, %v3041
  %v3043 = vadd.f32 %v3039, %v3042
  %vm3044 = vweird.f32 %v2937
  %vm3045 = vweird.f32 %v3039
  %vm3046 = vmor %vm3044, %vm3045
  %v3047 = vsel %vm3046, %v3039, %v3043
  %v3048 = vand.u32 2147483647, %v2937
  %vm3049 = vcmp.eq.f32.partialorder %v3048, 8.507059e+37
  %v3050 = vand.u32 %v2937, 2147483648
  %v3051 = vor.u32 1.1754944e-38, %v3050
  %v3052 = vsel %vm3049, %v3051, %v3047
  %v3053 = vmul.f32 %v2807, %v3052
  %v3054 = vrcp.pop %v2938
  %v3055 = vmul.f32 %v2938, %v3054
  %v3056 = vsub.f32 1.0, %v3055
  %v3057 = vmul.f32 %v3054, %v3056
  %v3058 = vadd.f32 %v3054, %v3057
  %vm3059 = vweird.f32 %v2938
  %vm3060 = vweird.f32 %v3054
  %vm3061 = vmor %vm3059, %vm3060
  %v3062 = vsel %vm3061, %v3054, %v3058
  %v3063 = vand.u32 2147483647, %v2938
  %vm3064 = vcmp.eq.f32.partialorder %v3063, 8.507059e+37
  %v3065 = vand.u32 %v2938, 2147483648
  %v3066 = vor.u32 1.1754944e-38, %v3065
  %v3067 = vsel %vm3064, %v3066, %v3062
  %v3068 = vmul.f32 %v2809, %v3067
  %v3069 = vrcp.pop %v2939
  %v3070 = vmul.f32 %v2939, %v3069
  %v3071 = vsub.f32 1.0, %v3070
  %v3072 = vmul.f32 %v3069, %v3071
  %v3073 = vadd.f32 %v3069, %v3072
  %vm3074 = vweird.f32 %v2939
  %vm3075 = vweird.f32 %v3069
  %vm3076 = vmor %vm3074, %vm3075
  %v3077 = vsel %vm3076, %v3069, %v3073
  %v3078 = vand.u32 2147483647, %v2939
  %vm3079 = vcmp.eq.f32.partialorder %v3078, 8.507059e+37
  %v3080 = vand.u32 %v2939, 2147483648
  %v3081 = vor.u32 1.1754944e-38, %v3080
  %v3082 = vsel %vm3079, %v3081, %v3077
  %v3083 = vmul.f32 %v2811, %v3082
  %v3084 = vrcp.pop %v2940
  %v3085 = vmul.f32 %v2940, %v3084
  %v3086 = vsub.f32 1.0, %v3085
  %v3087 = vmul.f32 %v3084, %v3086
  %v3088 = vadd.f32 %v3084, %v3087
  %vm3089 = vweird.f32 %v2940
  %vm3090 = vweird.f32 %v3084
  %vm3091 = vmor %vm3089, %vm3090
  %v3092 = vsel %vm3091, %v3084, %v3088
  %v3093 = vand.u32 2147483647, %v2940
  %vm3094 = vcmp.eq.f32.partialorder %v3093, 8.507059e+37
  %v3095 = vand.u32 %v2940, 2147483648
  %v3096 = vor.u32 1.1754944e-38, %v3095
  %v3097 = vsel %vm3094, %v3096, %v3092
  %v3098 = vmul.f32 %v2813, %v3097
  %v3099 = vrcp.pop %v2941
  %v3100 = vmul.f32 %v2941, %v3099
  %v3101 = vsub.f32 1.0, %v3100
  %v3102 = vmul.f32 %v3099, %v3101
  %v3103 = vadd.f32 %v3099, %v3102
  %vm3104 = vweird.f32 %v2941
  %vm3105 = vweird.f32 %v3099
  %vm3106 = vmor %vm3104, %vm3105
  %v3107 = vsel %vm3106, %v3099, %v3103
  %v3108 = vand.u32 2147483647, %v2941
  %vm3109 = vcmp.eq.f32.partialorder %v3108, 8.507059e+37
  %v3110 = vand.u32 %v2941, 2147483648
  %v3111 = vor.u32 1.1754944e-38, %v3110
  %v3112 = vsel %vm3109, %v3111, %v3107
  %v3113 = vmul.f32 %v2815, %v3112
  %v3114 = vrcp.pop %v2942
  %v3115 = vmul.f32 %v2942, %v3114
  %v3116 = vsub.f32 1.0, %v3115
  %v3117 = vmul.f32 %v3114, %v3116
  %v3118 = vadd.f32 %v3114, %v3117
  %vm3119 = vweird.f32 %v2942
  %vm3120 = vweird.f32 %v3114
  %vm3121 = vmor %vm3119, %vm3120
  %v3122 = vsel %vm3121, %v3114, %v3118
  %v3123 = vand.u32 2147483647, %v2942
  %vm3124 = vcmp.eq.f32.partialorder %v3123, 8.507059e+37
  %v3125 = vand.u32 %v2942, 2147483648
  %v3126 = vor.u32 1.1754944e-38, %v3125
  %v3127 = vsel %vm3124, %v3126, %v3122
  %v3128 = vmul.f32 %v2817, %v3127
  %v3129 = vrcp.pop %v2943
  %v3130 = vmul.f32 %v2943, %v3129
  %v3131 = vsub.f32 1.0, %v3130
  %v3132 = vmul.f32 %v3129, %v3131
  %v3133 = vadd.f32 %v3129, %v3132
  %vm3134 = vweird.f32 %v2943
  %vm3135 = vweird.f32 %v3129
  %vm3136 = vmor %vm3134, %vm3135
  %v3137 = vsel %vm3136, %v3129, %v3133
  %v3138 = vand.u32 2147483647, %v2943
  %vm3139 = vcmp.eq.f32.partialorder %v3138, 8.507059e+37
  %v3140 = vand.u32 %v2943, 2147483648
  %v3141 = vor.u32 1.1754944e-38, %v3140
  %v3142 = vsel %vm3139, %v3141, %v3137
  %v3143 = vmul.f32 %v2819, %v3142
  %v3144 = vrcp.pop %v2944
  %v3145 = vmul.f32 %v2944, %v3144
  %v3146 = vsub.f32 1.0, %v3145
  %v3147 = vmul.f32 %v3144, %v3146
  %v3148 = vadd.f32 %v3144, %v3147
  %vm3149 = vweird.f32 %v2944
  %vm3150 = vweird.f32 %v3144
  %vm3151 = vmor %vm3149, %vm3150
  %v3152 = vsel %vm3151, %v3144, %v3148
  %v3153 = vand.u32 2147483647, %v2944
  %vm3154 = vcmp.eq.f32.partialorder %v3153, 8.507059e+37
  %v3155 = vand.u32 %v2944, 2147483648
  %v3156 = vor.u32 1.1754944e-38, %v3155
  %v3157 = vsel %vm3154, %v3156, %v3152
  %v3158 = vmul.f32 %v2821, %v3157
  %v3159 = vrcp.pop %v2945
  %v3160 = vmul.f32 %v2945, %v3159
  %v3161 = vsub.f32 1.0, %v3160
  %v3162 = vmul.f32 %v3159, %v3161
  %v3163 = vadd.f32 %v3159, %v3162
  %vm3164 = vweird.f32 %v2945
  %vm3165 = vweird.f32 %v3159
  %vm3166 = vmor %vm3164, %vm3165
  %v3167 = vsel %vm3166, %v3159, %v3163
  %v3168 = vand.u32 2147483647, %v2945
  %vm3169 = vcmp.eq.f32.partialorder %v3168, 8.507059e+37
  %v3170 = vand.u32 %v2945, 2147483648
  %v3171 = vor.u32 1.1754944e-38, %v3170
  %v3172 = vsel %vm3169, %v3171, %v3167
  %v3173 = vmul.f32 %v2823, %v3172
  %v3174 = vrcp.pop %v2946
  %v3175 = vmul.f32 %v2946, %v3174
  %v3176 = vsub.f32 1.0, %v3175
  %v3177 = vmul.f32 %v3174, %v3176
  %v3178 = vadd.f32 %v3174, %v3177
  %vm3179 = vweird.f32 %v2946
  %vm3180 = vweird.f32 %v3174
  %vm3181 = vmor %vm3179, %vm3180
  %v3182 = vsel %vm3181, %v3174, %v3178
  %v3183 = vand.u32 2147483647, %v2946
  %vm3184 = vcmp.eq.f32.partialorder %v3183, 8.507059e+37
  %v3185 = vand.u32 %v2946, 2147483648
  %v3186 = vor.u32 1.1754944e-38, %v3185
  %v3187 = vsel %vm3184, %v3186, %v3182
  %v3188 = vmul.f32 %v2825, %v3187
  %v3189 = vrcp.pop %v2947
  %v3190 = vmul.f32 %v2947, %v3189
  %v3191 = vsub.f32 1.0, %v3190
  %v3192 = vmul.f32 %v3189, %v3191
  %v3193 = vadd.f32 %v3189, %v3192
  %vm3194 = vweird.f32 %v2947
  %vm3195 = vweird.f32 %v3189
  %vm3196 = vmor %vm3194, %vm3195
  %v3197 = vsel %vm3196, %v3189, %v3193
  %v3198 = vand.u32 2147483647, %v2947
  %vm3199 = vcmp.eq.f32.partialorder %v3198, 8.507059e+37
  %v3200 = vand.u32 %v2947, 2147483648
  %v3201 = vor.u32 1.1754944e-38, %v3200
  %v3202 = vsel %vm3199, %v3201, %v3197
  %v3203 = vmul.f32 %v2827, %v3202
  %3220 = vset.pattern.permute.xlu0 0
  %3221 = vperm.xlu0 %3220, %v2978
  %v3222 = vpop.permute.xlu0 %3221
  %3223 = vset.pattern.permute.xlu0 0
  %3224 = vperm.xlu0 %3223, %v2993
  %v3225 = vpop.permute.xlu0 %3224
  %3226 = vset.pattern.permute.xlu0 0
  %3227 = vperm.xlu0 %3226, %v3008
  %v3228 = vpop.permute.xlu0 %3227
  %3229 = vset.pattern.permute.xlu0 0
  %3230 = vperm.xlu0 %3229, %v3023
  %v3231 = vpop.permute.xlu0 %3230
  %3232 = vset.pattern.permute.xlu0 0
  %3233 = vperm.xlu0 %3232, %v3038
  %v3234 = vpop.permute.xlu0 %3233
  %3235 = vset.pattern.permute.xlu0 0
  %3236 = vperm.xlu0 %3235, %v3053
  %v3237 = vpop.permute.xlu0 %3236
  %3238 = vset.pattern.permute.xlu0 0
  %3239 = vperm.xlu0 %3238, %v3068
  %v3240 = vpop.permute.xlu0 %3239
  %3241 = vset.pattern.permute.xlu0 0
  %3242 = vperm.xlu0 %3241, %v3083
  %v3243 = vpop.permute.xlu0 %3242
  %3244 = vset.pattern.permute.xlu0 0
  %3245 = vperm.xlu0 %3244, %v3098
  %v3246 = vpop.permute.xlu0 %3245
  %3247 = vset.pattern.permute.xlu0 0
  %3248 = vperm.xlu0 %3247, %v3113
  %v3249 = vpop.permute.xlu0 %3248
  %3250 = vset.pattern.permute.xlu0 0
  %3251 = vperm.xlu0 %3250, %v3128
  %v3252 = vpop.permute.xlu0 %3251
  %3253 = vset.pattern.permute.xlu0 0
  %3254 = vperm.xlu0 %3253, %v3143
  %v3255 = vpop.permute.xlu0 %3254
  %3256 = vset.pattern.permute.xlu0 0
  %3257 = vperm.xlu0 %3256, %v3158
  %v3258 = vpop.permute.xlu0 %3257
  %3259 = vset.pattern.permute.xlu0 0
  %3260 = vperm.xlu0 %3259, %v3173
  %v3261 = vpop.permute.xlu0 %3260
  %3262 = vset.pattern.permute.xlu0 0
  %3263 = vperm.xlu0 %3262, %v3188
  %v3264 = vpop.permute.xlu0 %3263
  %3265 = vset.pattern.permute.xlu0 0
  %3266 = vperm.xlu0 %3265, %v3203
  %v3267 = vpop.permute.xlu0 %3266
  %v3268 = vperm.slane %v3222, %v638
  %v3269 = vperm.slane %v3225, %v638
  %v3270 = vperm.slane %v3228, %v638
  %v3271 = vperm.slane %v3231, %v638
  %v3272 = vperm.slane %v3234, %v638
  %v3273 = vperm.slane %v3237, %v638
  %v3274 = vperm.slane %v3240, %v638
  %v3275 = vperm.slane %v3243, %v638
  %v3276 = vperm.slane %v3246, %v638
  %v3277 = vperm.slane %v3249, %v638
  %v3278 = vperm.slane %v3252, %v638
  %v3279 = vperm.slane %v3255, %v638
  %v3280 = vperm.slane %v3258, %v638
  %v3281 = vperm.slane %v3261, %v638
  %v3282 = vperm.slane %v3264, %v638
  %v3283 = vperm.slane %v3267, %v638
  %v3284 = vsel %vm655, %v3269, %v3268
  %v3285 = vsel %vm657, %v3270, %v3284
  %v3286 = vsel %vm659, %v3271, %v3285
  %v3287 = vsel %vm661, %v3272, %v3286
  %v3288 = vsel %vm663, %v3273, %v3287
  %v3289 = vsel %vm665, %v3274, %v3288
  %v3290 = vsel %vm667, %v3275, %v3289
  %v3291 = vsel %vm655, %v3277, %v3276
  %v3292 = vsel %vm657, %v3278, %v3291
  %v3293 = vsel %vm659, %v3279, %v3292
  %v3294 = vsel %vm661, %v3280, %v3293
  %v3295 = vsel %vm663, %v3281, %v3294
  %v3296 = vsel %vm665, %v3282, %v3295
  %v3297 = vsel %vm667, %v3283, %v3296
  %3300 = vst.msk [vmem:[%s13] sm:$0xff] %vm49, %v3290
  %3301 = vst.msk [vmem:[%s13 + $0x8] sm:$0xff] %vm49, %v3297
  // Predicated region
  $region54: #{actor_forward.1} parent=0 // pred_check
    _
  $region55: #{actor_forward.1} parent=0 // pred_check_branch
    %3303 = sbr.rel (0) target = $region57
  $region56: #{actor_forward.1} parent=0 // pred_region
    _
  $region57: #{actor_forward.1} parent=0 // pred_fallthru
    _
  // Predicated region
  $region58: #{actor_forward.1} parent=0 // pred_check
    _
  $region59: #{actor_forward.1} parent=0 // pred_check_branch
    %3305 = sbr.rel (0) target = $region61
  $region60: #{actor_forward.1} parent=0 // pred_region
    _
  $region61: #{actor_forward.1} parent=0 // pred_fallthru
    _

</llo_original>
